<compile_context>
chip_gen: v6e
topology: v6e:2x2x1
jax: 0.10.0
libtpu: 0.0.40
codegen_flags: <defaults>
</compile_context>

<pallas_src>
import functools
import math

import jax
import jax.numpy as jnp
from jax import lax
from jax.experimental import pallas as pl
from jax.experimental.pallas import tpu as pltpu

LN_EPS = 1e-5  # roberta-base layer_norm_eps


def _layer_norm(x, gamma, beta):
    mean = jnp.mean(x, axis=-1, keepdims=True)
    var = jnp.mean(jnp.square(x - mean), axis=-1, keepdims=True)
    return (x - mean) * lax.rsqrt(var + LN_EPS) * gamma + beta


def _gelu_tanh(x):
    c = math.sqrt(2.0 / math.pi)
    return 0.5 * x * (1.0 + jnp.tanh(c * (x + 0.044715 * x * x * x)))


def roberta_layer_kernel(num_heads,
                         x_ref, posadd_ref, bias_ref, eg_ref, eb_ref,
                         wqkv_ref, bqkv_ref, wo_ref, bo_ref, g1_ref, b1_ref,
                         w1_ref, c1_ref, w2_ref, c2_ref, g2_ref, b2_ref,
                         out_ref, h_ref):
    """One grid step == one encoder layer (per-layer weights streamed into VMEM)."""
    l = pl.program_id(0)
    BS, H = h_ref.shape
    dh = H // num_heads
    scale = 1.0 / math.sqrt(dh)

    # --- embeddings: inputs_embeds + position + token_type, then LayerNorm (first step only) ---
    @pl.when(l == 0)
    def _():
        h_ref[...] = _layer_norm(x_ref[...] + posadd_ref[...], eg_ref[...], eb_ref[...])

    h = h_ref[...]                                                    # [BS, H]

    # --- multi-head self attention (fused QKV, block-diagonal bias over flattened B*S rows) ---
    qkv = jnp.dot(h, wqkv_ref[0], preferred_element_type=jnp.float32) + bqkv_ref[0]   # [BS, 3H]
    wo = wo_ref[0]                                                    # [H, H]

    attn = jnp.zeros((BS, H), jnp.float32)
    for hd in range(num_heads):
        o = hd * dh
        qh = qkv[:, o:o + dh] * scale                                 # scale folded into q
        kh = qkv[:, H + o:H + o + dh]
        vh = qkv[:, 2 * H + o:2 * H + o + dh]
        # scores via dot_general contracting last dims (no explicit transpose)
        s = lax.dot_general(qh, kh, (((1,), (1,)), ((), ())),
                            preferred_element_type=jnp.float32)       # [BS, BS]
        s = s + bias_ref[...]                                         # -1e30 off-batch blocks
        s = s - jnp.max(s, axis=-1, keepdims=True)
        p = jnp.exp(s)
        p = p * pl.reciprocal(jnp.sum(p, axis=-1, keepdims=True), approx=True)
        ctx = jnp.dot(p, vh, preferred_element_type=jnp.float32)      # [BS, dh]
        # accumulate the per-head slice of the output projection directly
        # (avoids concatenating 8-lane chunks / lane reassembly)
        attn = attn + jnp.dot(ctx, wo[o:o + dh, :], preferred_element_type=jnp.float32)
    attn = attn + bo_ref[0]
    h = _layer_norm(h + attn, g1_ref[0], b1_ref[0])

    # --- feed-forward ---
    ff = jnp.dot(h, w1_ref[0], preferred_element_type=jnp.float32) + c1_ref[0]
    ff = _gelu_tanh(ff)
    ff = jnp.dot(ff, w2_ref[0], preferred_element_type=jnp.float32) + c2_ref[0]
    h = _layer_norm(h + ff, g2_ref[0], b2_ref[0])

    h_ref[...] = h

    @pl.when(l == pl.num_programs(0) - 1)
    def _():
        if out_ref.shape == (BS, H):
            out_ref[...] = h.astype(out_ref.dtype)
        else:
            # lane-dense output slab: pack F groups of R consecutive rows side by side
            # along lanes so the final store is unmasked (128-lane wide).
            R = out_ref.shape[0]
            F = BS // R
            pieces = [h[k * R:(k + 1) * R, :] for k in range(F)]
            out_ref[...] = jnp.concatenate(pieces, axis=-1).astype(out_ref.dtype)


def transformer_context_forward(cls_embeddings, params, *, num_layers, num_heads):
    B, S, H = cls_embeddings.shape
    L = num_layers
    I = params["w1"].shape[-1]
    BS = B * S

    # ---- wrapper-side packing (pure layout plumbing, plain XLA ops) ----
    x2 = cls_embeddings.reshape(BS, H)
    # position (Roberta offset already applied in params) + token-type-0 row, tiled over batch
    posadd = jnp.tile(params["pos"] + params["typ"], (B, 1))                     # [BS, H]
    # block-diagonal bias: flattened rows never attend across batch elements
    batch_id = jnp.arange(BS, dtype=jnp.int32) // S
    attn_bias = jnp.where(batch_id[:, None] == batch_id[None, :],
                          0.0, -1e30).astype(jnp.float32)                       # [BS, BS]
    # fused QKV weights / biases
    wqkv = jnp.concatenate([params["wq"], params["wk"], params["wv"]], axis=-1)  # [L, H, 3H]
    bqkv = jnp.concatenate([params["bq"], params["bk"], params["bv"]], axis=-1)  # [L, 1, 3H]

    # lane-dense output slab when it tiles evenly into 128 lanes
    if H < 128 and 128 % H == 0 and BS % (128 // H) == 0:
        F = 128 // H
        R = BS // F
        out_inner = (R, F * H)
    else:
        out_inner = (BS, H)

    def const(shape):
        return pl.BlockSpec(shape, lambda l, _n=len(shape): (0,) * _n)

    def per_layer(shape):
        return pl.BlockSpec(shape, lambda l, _n=len(shape): (l,) + (0,) * (_n - 1))

    kernel = functools.partial(roberta_layer_kernel, num_heads)

    in_specs = [
        const((BS, H)),                                   # cls embeddings (flattened)
        const((BS, H)),                                   # position + token-type add
        const((BS, BS)),                                  # block-diagonal attention bias
        const((1, H)), const((1, H)),                     # embedding LayerNorm gamma/beta
        per_layer((1, H, 3 * H)), per_layer((1, 1, 3 * H)),   # fused Wqkv, bqkv
        per_layer((1, H, H)), per_layer((1, 1, H)),           # Wo, bo
        per_layer((1, 1, H)), per_layer((1, 1, H)),           # attn-output LayerNorm
        per_layer((1, H, I)), per_layer((1, 1, I)),           # W1, c1 (intermediate)
        per_layer((1, I, H)), per_layer((1, 1, H)),           # W2, c2 (output)
        per_layer((1, 1, H)), per_layer((1, 1, H)),           # ffn-output LayerNorm
    ]

    out_flat = pl.pallas_call(
        kernel,
        grid=(L,),
        in_specs=in_specs,
        out_specs=pl.BlockSpec(out_inner, lambda l: (0, 0)),
        out_shape=jax.ShapeDtypeStruct(out_inner, jnp.float32),
        scratch_shapes=[pltpu.VMEM((BS, H), jnp.float32)],          # h carried across layers
        compiler_params=pltpu.CompilerParams(dimension_semantics=("arbitrary",)),
    )(x2, posadd, attn_bias,
      params["emb_g"], params["emb_b"],
      wqkv, bqkv, params["wo"], params["bo"],
      params["g1"], params["b1"], params["w1"], params["c1"],
      params["w2"], params["c2"], params["g2"], params["b2"])

    if out_inner != (BS, H):
        R, _ = out_inner
        F = BS // R
        h_out = out_flat.reshape(R, F, H).transpose(1, 0, 2).reshape(BS, H)
    else:
        h_out = out_flat
    return h_out.reshape(B, S, H)


def reference_forward(x, params, *, num_layers, num_heads):
    """Pure-JAX reference of the same RobertaModel(inputs_embeds=...) forward."""
    B, S, H = x.shape
    dh = H // num_heads
    h = x + params["pos"][None] + params["typ"][None]
    h = _layer_norm(h, params["emb_g"], params["emb_b"])
    for l in range(num_layers):
        q = h @ params["wq"][l] + params["bq"][l]
        k = h @ params["wk"][l] + params["bk"][l]
        v = h @ params["wv"][l] + params["bv"][l]
        qh = q.reshape(B, S, num_heads, dh)
        kh = k.reshape(B, S, num_heads, dh)
        vh = v.reshape(B, S, num_heads, dh)
        s = jnp.einsum("bqnd,bknd->bnqk", qh, kh) / math.sqrt(dh)
        p = jax.nn.softmax(s, axis=-1)
        ctx = jnp.einsum("bnqk,bknd->bqnd", p, vh).reshape(B, S, H)
        attn = ctx @ params["wo"][l] + params["bo"][l]
        h = _layer_norm(h + attn, params["g1"][l], params["b1"][l])
        ff = _gelu_tanh(h @ params["w1"][l] + params["c1"][l])
        ff = ff @ params["w2"][l] + params["c2"][l]
        h = _layer_norm(h + ff, params["g2"][l], params["b2"][l])
    return h


def init_params(key, *, num_layers, hidden, intermediate, seq_len, max_pos):
    L, H, I, S = num_layers, hidden, intermediate, seq_len
    ks = iter(jax.random.split(key, 20))
    n = lambda k, shape: (0.02 * jax.random.normal(k, shape)).astype(jnp.float32)
    pos_table = n(next(ks), (max_pos, H))
    params = {
        # Roberta: position ids for inputs_embeds start at padding_idx + 1 = 2
        "pos": pos_table[2:2 + S],
        "typ": n(next(ks), (1, H)),                 # token_type id 0 row
        "emb_g": jnp.ones((1, H), jnp.float32),
        "emb_b": jnp.zeros((1, H), jnp.float32),
        "wq": n(next(ks), (L, H, H)), "bq": n(next(ks), (L, 1, H)),
        "wk": n(next(ks), (L, H, H)), "bk": n(next(ks), (L, 1, H)),
        "wv": n(next(ks), (L, H, H)), "bv": n(next(ks), (L, 1, H)),
        "wo": n(next(ks), (L, H, H)), "bo": n(next(ks), (L, 1, H)),
        "g1": jnp.ones((L, 1, H), jnp.float32), "b1": jnp.zeros((L, 1, H), jnp.float32),
        "w1": n(next(ks), (L, H, I)), "c1": n(next(ks), (L, 1, I)),
        "w2": n(next(ks), (L, I, H)), "c2": n(next(ks), (L, 1, H)),
        "g2": jnp.ones((L, 1, H), jnp.float32), "b2": jnp.zeros((L, 1, H), jnp.float32),
    }
    return params


if __name__ == "__main__":
    # Small config consistent with the module:
    #   hidden_dim=32, num_sent_attn_heads=4, num_contextual_layers=2,
    #   max_num_sentences=8 (-> max_position_embeddings = 8 + 20), intermediate=128.
    B, S, H, NH, L, I = 2, 8, 32, 4, 2, 128
    MAX_POS = S + 20

    key = jax.random.PRNGKey(0)
    k_params, k_x = jax.random.split(key)
    params = init_params(k_params, num_layers=L, hidden=H, intermediate=I,
                         seq_len=S, max_pos=MAX_POS)
    cls_embeddings = jax.random.normal(k_x, (B, S, H), jnp.float32)

    out = transformer_context_forward(cls_embeddings, params,
                                      num_layers=L, num_heads=NH)
    out = jax.block_until_ready(out)

    ref = reference_forward(cls_embeddings, params, num_layers=L, num_heads=NH)
    if not jnp.allclose(out, ref, atol=2e-3, rtol=2e-3):
        raise AssertionError("Pallas kernel output does not match JAX reference")

    print("KERNEL_OK")
</pallas_src>

<mosaic_0001>
module attributes {stable_mosaic.version = 11 : i64} {
  func.func @roberta_layer_kernel(%arg0: i32, %arg1: memref<16x32xf32, #tpu.memory_space<vmem>>, %arg2: memref<16x32xf32, #tpu.memory_space<vmem>>, %arg3: memref<16x16xf32, #tpu.memory_space<vmem>>, %arg4: memref<1x32xf32, #tpu.memory_space<vmem>>, %arg5: memref<1x32xf32, #tpu.memory_space<vmem>>, %arg6: memref<1x32x96xf32, #tpu.memory_space<vmem>>, %arg7: memref<1x1x96xf32, #tpu.memory_space<vmem>>, %arg8: memref<1x32x32xf32, #tpu.memory_space<vmem>>, %arg9: memref<1x1x32xf32, #tpu.memory_space<vmem>>, %arg10: memref<1x1x32xf32, #tpu.memory_space<vmem>>, %arg11: memref<1x1x32xf32, #tpu.memory_space<vmem>>, %arg12: memref<1x32x128xf32, #tpu.memory_space<vmem>>, %arg13: memref<1x1x128xf32, #tpu.memory_space<vmem>>, %arg14: memref<1x128x32xf32, #tpu.memory_space<vmem>>, %arg15: memref<1x1x32xf32, #tpu.memory_space<vmem>>, %arg16: memref<1x1x32xf32, #tpu.memory_space<vmem>>, %arg17: memref<1x1x32xf32, #tpu.memory_space<vmem>>, %arg18: memref<4x128xf32, #tpu.memory_space<vmem>>, %arg19: memref<16x32xf32, #tpu.memory_space<vmem>>) attributes {dimension_semantics = [#tpu.dimension_semantics<arbitrary>], iteration_bounds = array<i64: 2>, scalar_prefetch = 0 : i64, scratch_operands = 1 : i64, tpu.core_type = #tpu.core_type<tc>, window_params = [{pipeline_mode = #tpu.pipeline_mode<synchronous>, transform_indices = @transform_0, window_bounds = array<i64: 16, 32>}, {pipeline_mode = #tpu.pipeline_mode<synchronous>, transform_indices = @transform_1, window_bounds = array<i64: 16, 32>}, {pipeline_mode = #tpu.pipeline_mode<synchronous>, transform_indices = @transform_2, window_bounds = array<i64: 16, 16>}, {pipeline_mode = #tpu.pipeline_mode<synchronous>, transform_indices = @transform_3, window_bounds = array<i64: 1, 32>}, {pipeline_mode = #tpu.pipeline_mode<synchronous>, transform_indices = @transform_4, window_bounds = array<i64: 1, 32>}, {transform_indices = @transform_5, window_bounds = array<i64: 1, 32, 96>}, {transform_indices = @transform_6, window_bounds = array<i64: 1, 1, 96>}, {transform_indices = @transform_7, window_bounds = array<i64: 1, 32, 32>}, {transform_indices = @transform_8, window_bounds = array<i64: 1, 1, 32>}, {transform_indices = @transform_9, window_bounds = array<i64: 1, 1, 32>}, {transform_indices = @transform_10, window_bounds = array<i64: 1, 1, 32>}, {transform_indices = @transform_11, window_bounds = array<i64: 1, 32, 128>}, {transform_indices = @transform_12, window_bounds = array<i64: 1, 1, 128>}, {transform_indices = @transform_13, window_bounds = array<i64: 1, 128, 32>}, {transform_indices = @transform_14, window_bounds = array<i64: 1, 1, 32>}, {transform_indices = @transform_15, window_bounds = array<i64: 1, 1, 32>}, {transform_indices = @transform_16, window_bounds = array<i64: 1, 1, 32>}, {pipeline_mode = #tpu.pipeline_mode<synchronous>, transform_indices = @transform_17, window_bounds = array<i64: 4, 128>}]} {
    %c0_i32 = arith.constant 0 : i32
    %0 = arith.cmpi eq, %arg0, %c0_i32 : i32
    %1 = arith.extui %0 : i1 to i32
    %c0_i32_0 = arith.constant 0 : i32
    %2 = arith.cmpi ne, %1, %c0_i32_0 : i32
    scf.if %2 {
      %c0_90 = arith.constant 0 : index
      %c0_91 = arith.constant 0 : index
      %191 = vector.load %arg1[%c0_90, %c0_91] : memref<16x32xf32, #tpu.memory_space<vmem>>, vector<16x32xf32>
      %c0_92 = arith.constant 0 : index
      %c0_93 = arith.constant 0 : index
      %192 = vector.load %arg2[%c0_92, %c0_93] : memref<16x32xf32, #tpu.memory_space<vmem>>, vector<16x32xf32>
      %193 = arith.addf %191, %192 : vector<16x32xf32>
      %c0_94 = arith.constant 0 : index
      %c0_95 = arith.constant 0 : index
      %194 = vector.load %arg4[%c0_94, %c0_95] : memref<1x32xf32, #tpu.memory_space<vmem>>, vector<1x32xf32>
      %c0_96 = arith.constant 0 : index
      %c0_97 = arith.constant 0 : index
      %195 = vector.load %arg5[%c0_96, %c0_97] : memref<1x32xf32, #tpu.memory_space<vmem>>, vector<1x32xf32>
      %cst_98 = arith.constant dense<0.000000e+00> : vector<16xf32>
      %196 = vector.multi_reduction <add>, %193, %cst_98 [1] : vector<16x32xf32> to vector<16xf32>
      %197 = vector.shape_cast %196 : vector<16xf32> to vector<16x1xf32>
      %cst_99 = arith.constant 3.200000e+01 : f32
      %198 = vector.broadcast %cst_99 : f32 to vector<16x1xf32>
      %199 = arith.divf %197, %198 : vector<16x1xf32>
      %200 = vector.broadcast %199 : vector<16x1xf32> to vector<16x32xf32>
      %201 = arith.subf %193, %200 : vector<16x32xf32>
      %202 = arith.mulf %201, %201 : vector<16x32xf32>
      %cst_100 = arith.constant dense<0.000000e+00> : vector<16xf32>
      %203 = vector.multi_reduction <add>, %202, %cst_100 [1] : vector<16x32xf32> to vector<16xf32>
      %204 = vector.shape_cast %203 : vector<16xf32> to vector<16x1xf32>
      %cst_101 = arith.constant 3.200000e+01 : f32
      %205 = vector.broadcast %cst_101 : f32 to vector<16x1xf32>
      %206 = arith.divf %204, %205 : vector<16x1xf32>
      %207 = vector.broadcast %199 : vector<16x1xf32> to vector<16x32xf32>
      %208 = arith.subf %193, %207 : vector<16x32xf32>
      %cst_102 = arith.constant 9.99999974E-6 : f32
      %209 = vector.broadcast %cst_102 : f32 to vector<16x1xf32>
      %210 = arith.addf %206, %209 : vector<16x1xf32>
      %211 = math.rsqrt %210 : vector<16x1xf32>
      %212 = vector.broadcast %211 : vector<16x1xf32> to vector<16x32xf32>
      %213 = arith.mulf %208, %212 : vector<16x32xf32>
      %214 = vector.broadcast %194 : vector<1x32xf32> to vector<16x32xf32>
      %215 = arith.mulf %213, %214 : vector<16x32xf32>
      %216 = vector.broadcast %195 : vector<1x32xf32> to vector<16x32xf32>
      %217 = arith.addf %215, %216 : vector<16x32xf32>
      %c0_103 = arith.constant 0 : index
      %c0_104 = arith.constant 0 : index
      %218 = vector.load %arg19[%c0_103, %c0_104] : memref<16x32xf32, #tpu.memory_space<vmem>>, vector<16x32xf32>
      tpu.vector_store %arg19[%c0_103, %c0_104], %217 {strides = array<i32>} : memref<16x32xf32, #tpu.memory_space<vmem>>, vector<16x32xf32>,
    } else {
    }
    %c0 = arith.constant 0 : index
    %c0_1 = arith.constant 0 : index
    %3 = vector.load %arg19[%c0, %c0_1] : memref<16x32xf32, #tpu.memory_space<vmem>>, vector<16x32xf32>
    %c0_2 = arith.constant 0 : index
    %c0_3 = arith.constant 0 : index
    %c0_4 = arith.constant 0 : index
    %4 = vector.load %arg6[%c0_2, %c0_3, %c0_4] : memref<1x32x96xf32, #tpu.memory_space<vmem>>, vector<1x32x96xf32>
    %5 = vector.shape_cast %4 : vector<1x32x96xf32> to vector<32x96xf32>
    %cst = arith.constant dense<0.000000e+00> : vector<16x96xf32>
    %6 = tpu.matmul %3, %5, %cst {dimension_numbers = #tpu.dot_dimension_numbers<[1], [0], [0], [1], [0, 0, 1, 1], [], []>} : vector<16x32xf32>, vector<32x96xf32>, vector<16x96xf32> -> vector<16x96xf32>
    %c0_5 = arith.constant 0 : index
    %c0_6 = arith.constant 0 : index
    %c0_7 = arith.constant 0 : index
    %7 = vector.load %arg7[%c0_5, %c0_6, %c0_7] : memref<1x1x96xf32, #tpu.memory_space<vmem>>, vector<1x1x96xf32>
    %8 = vector.shape_cast %7 : vector<1x1x96xf32> to vector<1x96xf32>
    %9 = vector.broadcast %8 : vector<1x96xf32> to vector<16x96xf32>
    %10 = arith.addf %6, %9 : vector<16x96xf32>
    %c0_8 = arith.constant 0 : index
    %c0_9 = arith.constant 0 : index
    %c0_10 = arith.constant 0 : index
    %11 = vector.load %arg8[%c0_8, %c0_9, %c0_10] : memref<1x32x32xf32, #tpu.memory_space<vmem>>, vector<1x32x32xf32>
    %12 = vector.shape_cast %11 : vector<1x32x32xf32> to vector<32x32xf32>
    %cst_11 = arith.constant 0.000000e+00 : f32
    %13 = vector.broadcast %cst_11 : f32 to vector<16x32xf32>
    %14 = vector.extract_strided_slice %10 {offsets = [0, 0], sizes = [16, 8], strides = [1, 1]} : vector<16x96xf32> to vector<16x8xf32>
    %cst_12 = arith.constant 0.353553385 : f32
    %15 = vector.broadcast %cst_12 : f32 to vector<16x8xf32>
    %16 = arith.mulf %14, %15 : vector<16x8xf32>
    %17 = vector.extract_strided_slice %10 {offsets = [0, 32], sizes = [16, 8], strides = [1, 1]} : vector<16x96xf32> to vector<16x8xf32>
    %18 = vector.extract_strided_slice %10 {offsets = [0, 64], sizes = [16, 8], strides = [1, 1]} : vector<16x96xf32> to vector<16x8xf32>
    %cst_13 = arith.constant dense<0.000000e+00> : vector<16x16xf32>
    %19 = tpu.matmul %16, %17, %cst_13 {dimension_numbers = #tpu.dot_dimension_numbers<[1], [1], [0], [0], [0, 0, 1, 0], [], []>} : vector<16x8xf32>, vector<16x8xf32>, vector<16x16xf32> -> vector<16x16xf32>
    %c0_14 = arith.constant 0 : index
    %c0_15 = arith.constant 0 : index
    %20 = vector.load %arg3[%c0_14, %c0_15] : memref<16x16xf32, #tpu.memory_space<vmem>>, vector<16x16xf32>
    %21 = arith.addf %19, %20 : vector<16x16xf32>
    %cst_16 = arith.constant dense<0xFF800000> : vector<16xf32>
    %22 = vector.multi_reduction <maximumf>, %21, %cst_16 [1] : vector<16x16xf32> to vector<16xf32>
    %23 = vector.shape_cast %22 : vector<16xf32> to vector<16x1xf32>
    %24 = vector.broadcast %23 : vector<16x1xf32> to vector<16x16xf32>
    %25 = arith.subf %21, %24 : vector<16x16xf32>
    %26 = math.exp %25 : vector<16x16xf32>
    %cst_17 = arith.constant dense<0.000000e+00> : vector<16xf32>
    %27 = vector.multi_reduction <add>, %26, %cst_17 [1] : vector<16x16xf32> to vector<16xf32>
    %28 = vector.shape_cast %27 : vector<16xf32> to vector<16x1xf32>
    %29 = tpu.reciprocal %28 {approx = true} : vector<16x1xf32> -> vector<16x1xf32>
    %30 = vector.broadcast %29 : vector<16x1xf32> to vector<16x16xf32>
    %31 = arith.mulf %26, %30 : vector<16x16xf32>
    %cst_18 = arith.constant dense<0.000000e+00> : vector<16x8xf32>
    %32 = tpu.matmul %31, %18, %cst_18 {dimension_numbers = #tpu.dot_dimension_numbers<[1], [0], [0], [1], [0, 0, 1, 1], [], []>} : vector<16x16xf32>, vector<16x8xf32>, vector<16x8xf32> -> vector<16x8xf32>
    %33 = vector.extract_strided_slice %12 {offsets = [0, 0], sizes = [8, 32], strides = [1, 1]} : vector<32x32xf32> to vector<8x32xf32>
    %cst_19 = arith.constant dense<0.000000e+00> : vector<16x32xf32>
    %34 = tpu.matmul %32, %33, %cst_19 {dimension_numbers = #tpu.dot_dimension_numbers<[1], [0], [0], [1], [0, 0, 1, 1], [], []>} : vector<16x8xf32>, vector<8x32xf32>, vector<16x32xf32> -> vector<16x32xf32>
    %35 = arith.addf %13, %34 : vector<16x32xf32>
    %36 = vector.extract_strided_slice %10 {offsets = [0, 8], sizes = [16, 8], strides = [1, 1]} : vector<16x96xf32> to vector<16x8xf32>
    %cst_20 = arith.constant 0.353553385 : f32
    %37 = vector.broadcast %cst_20 : f32 to vector<16x8xf32>
    %38 = arith.mulf %36, %37 : vector<16x8xf32>
    %39 = vector.extract_strided_slice %10 {offsets = [0, 40], sizes = [16, 8], strides = [1, 1]} : vector<16x96xf32> to vector<16x8xf32>
    %40 = vector.extract_strided_slice %10 {offsets = [0, 72], sizes = [16, 8], strides = [1, 1]} : vector<16x96xf32> to vector<16x8xf32>
    %cst_21 = arith.constant dense<0.000000e+00> : vector<16x16xf32>
    %41 = tpu.matmul %38, %39, %cst_21 {dimension_numbers = #tpu.dot_dimension_numbers<[1], [1], [0], [0], [0, 0, 1, 0], [], []>} : vector<16x8xf32>, vector<16x8xf32>, vector<16x16xf32> -> vector<16x16xf32>
    %c0_22 = arith.constant 0 : index
    %c0_23 = arith.constant 0 : index
    %42 = vector.load %arg3[%c0_22, %c0_23] : memref<16x16xf32, #tpu.memory_space<vmem>>, vector<16x16xf32>
    %43 = arith.addf %41, %42 : vector<16x16xf32>
    %cst_24 = arith.constant dense<0xFF800000> : vector<16xf32>
    %44 = vector.multi_reduction <maximumf>, %43, %cst_24 [1] : vector<16x16xf32> to vector<16xf32>
    %45 = vector.shape_cast %44 : vector<16xf32> to vector<16x1xf32>
    %46 = vector.broadcast %45 : vector<16x1xf32> to vector<16x16xf32>
    %47 = arith.subf %43, %46 : vector<16x16xf32>
    %48 = math.exp %47 : vector<16x16xf32>
    %cst_25 = arith.constant dense<0.000000e+00> : vector<16xf32>
    %49 = vector.multi_reduction <add>, %48, %cst_25 [1] : vector<16x16xf32> to vector<16xf32>
    %50 = vector.shape_cast %49 : vector<16xf32> to vector<16x1xf32>
    %51 = tpu.reciprocal %50 {approx = true} : vector<16x1xf32> -> vector<16x1xf32>
    %52 = vector.broadcast %51 : vector<16x1xf32> to vector<16x16xf32>
    %53 = arith.mulf %48, %52 : vector<16x16xf32>
    %cst_26 = arith.constant dense<0.000000e+00> : vector<16x8xf32>
    %54 = tpu.matmul %53, %40, %cst_26 {dimension_numbers = #tpu.dot_dimension_numbers<[1], [0], [0], [1], [0, 0, 1, 1], [], []>} : vector<16x16xf32>, vector<16x8xf32>, vector<16x8xf32> -> vector<16x8xf32>
    %55 = vector.extract_strided_slice %12 {offsets = [8, 0], sizes = [8, 32], strides = [1, 1]} : vector<32x32xf32> to vector<8x32xf32>
    %cst_27 = arith.constant dense<0.000000e+00> : vector<16x32xf32>
    %56 = tpu.matmul %54, %55, %cst_27 {dimension_numbers = #tpu.dot_dimension_numbers<[1], [0], [0], [1], [0, 0, 1, 1], [], []>} : vector<16x8xf32>, vector<8x32xf32>, vector<16x32xf32> -> vector<16x32xf32>
    %57 = arith.addf %35, %56 : vector<16x32xf32>
    %58 = vector.extract_strided_slice %10 {offsets = [0, 16], sizes = [16, 8], strides = [1, 1]} : vector<16x96xf32> to vector<16x8xf32>
    %cst_28 = arith.constant 0.353553385 : f32
    %59 = vector.broadcast %cst_28 : f32 to vector<16x8xf32>
    %60 = arith.mulf %58, %59 : vector<16x8xf32>
    %61 = vector.extract_strided_slice %10 {offsets = [0, 48], sizes = [16, 8], strides = [1, 1]} : vector<16x96xf32> to vector<16x8xf32>
    %62 = vector.extract_strided_slice %10 {offsets = [0, 80], sizes = [16, 8], strides = [1, 1]} : vector<16x96xf32> to vector<16x8xf32>
    %cst_29 = arith.constant dense<0.000000e+00> : vector<16x16xf32>
    %63 = tpu.matmul %60, %61, %cst_29 {dimension_numbers = #tpu.dot_dimension_numbers<[1], [1], [0], [0], [0, 0, 1, 0], [], []>} : vector<16x8xf32>, vector<16x8xf32>, vector<16x16xf32> -> vector<16x16xf32>
    %c0_30 = arith.constant 0 : index
    %c0_31 = arith.constant 0 : index
    %64 = vector.load %arg3[%c0_30, %c0_31] : memref<16x16xf32, #tpu.memory_space<vmem>>, vector<16x16xf32>
    %65 = arith.addf %63, %64 : vector<16x16xf32>
    %cst_32 = arith.constant dense<0xFF800000> : vector<16xf32>
    %66 = vector.multi_reduction <maximumf>, %65, %cst_32 [1] : vector<16x16xf32> to vector<16xf32>
    %67 = vector.shape_cast %66 : vector<16xf32> to vector<16x1xf32>
    %68 = vector.broadcast %67 : vector<16x1xf32> to vector<16x16xf32>
    %69 = arith.subf %65, %68 : vector<16x16xf32>
    %70 = math.exp %69 : vector<16x16xf32>
    %cst_33 = arith.constant dense<0.000000e+00> : vector<16xf32>
    %71 = vector.multi_reduction <add>, %70, %cst_33 [1] : vector<16x16xf32> to vector<16xf32>
    %72 = vector.shape_cast %71 : vector<16xf32> to vector<16x1xf32>
    %73 = tpu.reciprocal %72 {approx = true} : vector<16x1xf32> -> vector<16x1xf32>
    %74 = vector.broadcast %73 : vector<16x1xf32> to vector<16x16xf32>
    %75 = arith.mulf %70, %74 : vector<16x16xf32>
    %cst_34 = arith.constant dense<0.000000e+00> : vector<16x8xf32>
    %76 = tpu.matmul %75, %62, %cst_34 {dimension_numbers = #tpu.dot_dimension_numbers<[1], [0], [0], [1], [0, 0, 1, 1], [], []>} : vector<16x16xf32>, vector<16x8xf32>, vector<16x8xf32> -> vector<16x8xf32>
    %77 = vector.extract_strided_slice %12 {offsets = [16, 0], sizes = [8, 32], strides = [1, 1]} : vector<32x32xf32> to vector<8x32xf32>
    %cst_35 = arith.constant dense<0.000000e+00> : vector<16x32xf32>
    %78 = tpu.matmul %76, %77, %cst_35 {dimension_numbers = #tpu.dot_dimension_numbers<[1], [0], [0], [1], [0, 0, 1, 1], [], []>} : vector<16x8xf32>, vector<8x32xf32>, vector<16x32xf32> -> vector<16x32xf32>
    %79 = arith.addf %57, %78 : vector<16x32xf32>
    %80 = vector.extract_strided_slice %10 {offsets = [0, 24], sizes = [16, 8], strides = [1, 1]} : vector<16x96xf32> to vector<16x8xf32>
    %cst_36 = arith.constant 0.353553385 : f32
    %81 = vector.broadcast %cst_36 : f32 to vector<16x8xf32>
    %82 = arith.mulf %80, %81 : vector<16x8xf32>
    %83 = vector.extract_strided_slice %10 {offsets = [0, 56], sizes = [16, 8], strides = [1, 1]} : vector<16x96xf32> to vector<16x8xf32>
    %84 = vector.extract_strided_slice %10 {offsets = [0, 88], sizes = [16, 8], strides = [1, 1]} : vector<16x96xf32> to vector<16x8xf32>
    %cst_37 = arith.constant dense<0.000000e+00> : vector<16x16xf32>
    %85 = tpu.matmul %82, %83, %cst_37 {dimension_numbers = #tpu.dot_dimension_numbers<[1], [1], [0], [0], [0, 0, 1, 0], [], []>} : vector<16x8xf32>, vector<16x8xf32>, vector<16x16xf32> -> vector<16x16xf32>
    %c0_38 = arith.constant 0 : index
    %c0_39 = arith.constant 0 : index
    %86 = vector.load %arg3[%c0_38, %c0_39] : memref<16x16xf32, #tpu.memory_space<vmem>>, vector<16x16xf32>
    %87 = arith.addf %85, %86 : vector<16x16xf32>
    %cst_40 = arith.constant dense<0xFF800000> : vector<16xf32>
    %88 = vector.multi_reduction <maximumf>, %87, %cst_40 [1] : vector<16x16xf32> to vector<16xf32>
    %89 = vector.shape_cast %88 : vector<16xf32> to vector<16x1xf32>
    %90 = vector.broadcast %89 : vector<16x1xf32> to vector<16x16xf32>
    %91 = arith.subf %87, %90 : vector<16x16xf32>
    %92 = math.exp %91 : vector<16x16xf32>
    %cst_41 = arith.constant dense<0.000000e+00> : vector<16xf32>
    %93 = vector.multi_reduction <add>, %92, %cst_41 [1] : vector<16x16xf32> to vector<16xf32>
    %94 = vector.shape_cast %93 : vector<16xf32> to vector<16x1xf32>
    %95 = tpu.reciprocal %94 {approx = true} : vector<16x1xf32> -> vector<16x1xf32>
    %96 = vector.broadcast %95 : vector<16x1xf32> to vector<16x16xf32>
    %97 = arith.mulf %92, %96 : vector<16x16xf32>
    %cst_42 = arith.constant dense<0.000000e+00> : vector<16x8xf32>
    %98 = tpu.matmul %97, %84, %cst_42 {dimension_numbers = #tpu.dot_dimension_numbers<[1], [0], [0], [1], [0, 0, 1, 1], [], []>} : vector<16x16xf32>, vector<16x8xf32>, vector<16x8xf32> -> vector<16x8xf32>
    %99 = vector.extract_strided_slice %12 {offsets = [24, 0], sizes = [8, 32], strides = [1, 1]} : vector<32x32xf32> to vector<8x32xf32>
    %cst_43 = arith.constant dense<0.000000e+00> : vector<16x32xf32>
    %100 = tpu.matmul %98, %99, %cst_43 {dimension_numbers = #tpu.dot_dimension_numbers<[1], [0], [0], [1], [0, 0, 1, 1], [], []>} : vector<16x8xf32>, vector<8x32xf32>, vector<16x32xf32> -> vector<16x32xf32>
    %101 = arith.addf %79, %100 : vector<16x32xf32>
    %c0_44 = arith.constant 0 : index
    %c0_45 = arith.constant 0 : index
    %c0_46 = arith.constant 0 : index
    %102 = vector.load %arg9[%c0_44, %c0_45, %c0_46] : memref<1x1x32xf32, #tpu.memory_space<vmem>>, vector<1x1x32xf32>
    %103 = vector.shape_cast %102 : vector<1x1x32xf32> to vector<1x32xf32>
    %104 = vector.broadcast %103 : vector<1x32xf32> to vector<16x32xf32>
    %105 = arith.addf %101, %104 : vector<16x32xf32>
    %106 = arith.addf %3, %105 : vector<16x32xf32>
    %c0_47 = arith.constant 0 : index
    %c0_48 = arith.constant 0 : index
    %c0_49 = arith.constant 0 : index
    %107 = vector.load %arg10[%c0_47, %c0_48, %c0_49] : memref<1x1x32xf32, #tpu.memory_space<vmem>>, vector<1x1x32xf32>
    %108 = vector.shape_cast %107 : vector<1x1x32xf32> to vector<1x32xf32>
    %c0_50 = arith.constant 0 : index
    %c0_51 = arith.constant 0 : index
    %c0_52 = arith.constant 0 : index
    %109 = vector.load %arg11[%c0_50, %c0_51, %c0_52] : memref<1x1x32xf32, #tpu.memory_space<vmem>>, vector<1x1x32xf32>
    %110 = vector.shape_cast %109 : vector<1x1x32xf32> to vector<1x32xf32>
    %cst_53 = arith.constant dense<0.000000e+00> : vector<16xf32>
    %111 = vector.multi_reduction <add>, %106, %cst_53 [1] : vector<16x32xf32> to vector<16xf32>
    %112 = vector.shape_cast %111 : vector<16xf32> to vector<16x1xf32>
    %cst_54 = arith.constant 3.200000e+01 : f32
    %113 = vector.broadcast %cst_54 : f32 to vector<16x1xf32>
    %114 = arith.divf %112, %113 : vector<16x1xf32>
    %115 = vector.broadcast %114 : vector<16x1xf32> to vector<16x32xf32>
    %116 = arith.subf %106, %115 : vector<16x32xf32>
    %117 = arith.mulf %116, %116 : vector<16x32xf32>
    %cst_55 = arith.constant dense<0.000000e+00> : vector<16xf32>
    %118 = vector.multi_reduction <add>, %117, %cst_55 [1] : vector<16x32xf32> to vector<16xf32>
    %119 = vector.shape_cast %118 : vector<16xf32> to vector<16x1xf32>
    %cst_56 = arith.constant 3.200000e+01 : f32
    %120 = vector.broadcast %cst_56 : f32 to vector<16x1xf32>
    %121 = arith.divf %119, %120 : vector<16x1xf32>
    %122 = vector.broadcast %114 : vector<16x1xf32> to vector<16x32xf32>
    %123 = arith.subf %106, %122 : vector<16x32xf32>
    %cst_57 = arith.constant 9.99999974E-6 : f32
    %124 = vector.broadcast %cst_57 : f32 to vector<16x1xf32>
    %125 = arith.addf %121, %124 : vector<16x1xf32>
    %126 = math.rsqrt %125 : vector<16x1xf32>
    %127 = vector.broadcast %126 : vector<16x1xf32> to vector<16x32xf32>
    %128 = arith.mulf %123, %127 : vector<16x32xf32>
    %129 = vector.broadcast %108 : vector<1x32xf32> to vector<16x32xf32>
    %130 = arith.mulf %128, %129 : vector<16x32xf32>
    %131 = vector.broadcast %110 : vector<1x32xf32> to vector<16x32xf32>
    %132 = arith.addf %130, %131 : vector<16x32xf32>
    %c0_58 = arith.constant 0 : index
    %c0_59 = arith.constant 0 : index
    %c0_60 = arith.constant 0 : index
    %133 = vector.load %arg12[%c0_58, %c0_59, %c0_60] : memref<1x32x128xf32, #tpu.memory_space<vmem>>, vector<1x32x128xf32>
    %134 = vector.shape_cast %133 : vector<1x32x128xf32> to vector<32x128xf32>
    %cst_61 = arith.constant dense<0.000000e+00> : vector<16x128xf32>
    %135 = tpu.matmul %132, %134, %cst_61 {dimension_numbers = #tpu.dot_dimension_numbers<[1], [0], [0], [1], [0, 0, 1, 1], [], []>} : vector<16x32xf32>, vector<32x128xf32>, vector<16x128xf32> -> vector<16x128xf32>
    %c0_62 = arith.constant 0 : index
    %c0_63 = arith.constant 0 : index
    %c0_64 = arith.constant 0 : index
    %136 = vector.load %arg13[%c0_62, %c0_63, %c0_64] : memref<1x1x128xf32, #tpu.memory_space<vmem>>, vector<1x1x128xf32>
    %137 = vector.shape_cast %136 : vector<1x1x128xf32> to vector<1x128xf32>
    %138 = vector.broadcast %137 : vector<1x128xf32> to vector<16x128xf32>
    %139 = arith.addf %135, %138 : vector<16x128xf32>
    %cst_65 = arith.constant 5.000000e-01 : f32
    %140 = vector.broadcast %cst_65 : f32 to vector<16x128xf32>
    %141 = arith.mulf %140, %139 : vector<16x128xf32>
    %cst_66 = arith.constant 4.471500e-02 : f32
    %142 = vector.broadcast %cst_66 : f32 to vector<16x128xf32>
    %143 = arith.mulf %142, %139 : vector<16x128xf32>
    %144 = arith.mulf %143, %139 : vector<16x128xf32>
    %145 = arith.mulf %144, %139 : vector<16x128xf32>
    %146 = arith.addf %139, %145 : vector<16x128xf32>
    %cst_67 = arith.constant 0.797884583 : f32
    %147 = vector.broadcast %cst_67 : f32 to vector<16x128xf32>
    %148 = arith.mulf %147, %146 : vector<16x128xf32>
    %149 = math.tanh %148 : vector<16x128xf32>
    %cst_68 = arith.constant 1.000000e+00 : f32
    %150 = vector.broadcast %cst_68 : f32 to vector<16x128xf32>
    %151 = arith.addf %150, %149 : vector<16x128xf32>
    %152 = arith.mulf %141, %151 : vector<16x128xf32>
    %c0_69 = arith.constant 0 : index
    %c0_70 = arith.constant 0 : index
    %c0_71 = arith.constant 0 : index
    %153 = vector.load %arg14[%c0_69, %c0_70, %c0_71] : memref<1x128x32xf32, #tpu.memory_space<vmem>>, vector<1x128x32xf32>
    %154 = vector.shape_cast %153 : vector<1x128x32xf32> to vector<128x32xf32>
    %cst_72 = arith.constant dense<0.000000e+00> : vector<16x32xf32>
    %155 = tpu.matmul %152, %154, %cst_72 {dimension_numbers = #tpu.dot_dimension_numbers<[1], [0], [0], [1], [0, 0, 1, 1], [], []>} : vector<16x128xf32>, vector<128x32xf32>, vector<16x32xf32> -> vector<16x32xf32>
    %c0_73 = arith.constant 0 : index
    %c0_74 = arith.constant 0 : index
    %c0_75 = arith.constant 0 : index
    %156 = vector.load %arg15[%c0_73, %c0_74, %c0_75] : memref<1x1x32xf32, #tpu.memory_space<vmem>>, vector<1x1x32xf32>
    %157 = vector.shape_cast %156 : vector<1x1x32xf32> to vector<1x32xf32>
    %158 = vector.broadcast %157 : vector<1x32xf32> to vector<16x32xf32>
    %159 = arith.addf %155, %158 : vector<16x32xf32>
    %160 = arith.addf %132, %159 : vector<16x32xf32>
    %c0_76 = arith.constant 0 : index
    %c0_77 = arith.constant 0 : index
    %c0_78 = arith.constant 0 : index
    %161 = vector.load %arg16[%c0_76, %c0_77, %c0_78] : memref<1x1x32xf32, #tpu.memory_space<vmem>>, vector<1x1x32xf32>
    %162 = vector.shape_cast %161 : vector<1x1x32xf32> to vector<1x32xf32>
    %c0_79 = arith.constant 0 : index
    %c0_80 = arith.constant 0 : index
    %c0_81 = arith.constant 0 : index
    %163 = vector.load %arg17[%c0_79, %c0_80, %c0_81] : memref<1x1x32xf32, #tpu.memory_space<vmem>>, vector<1x1x32xf32>
    %164 = vector.shape_cast %163 : vector<1x1x32xf32> to vector<1x32xf32>
    %cst_82 = arith.constant dense<0.000000e+00> : vector<16xf32>
    %165 = vector.multi_reduction <add>, %160, %cst_82 [1] : vector<16x32xf32> to vector<16xf32>
    %166 = vector.shape_cast %165 : vector<16xf32> to vector<16x1xf32>
    %cst_83 = arith.constant 3.200000e+01 : f32
    %167 = vector.broadcast %cst_83 : f32 to vector<16x1xf32>
    %168 = arith.divf %166, %167 : vector<16x1xf32>
    %169 = vector.broadcast %168 : vector<16x1xf32> to vector<16x32xf32>
    %170 = arith.subf %160, %169 : vector<16x32xf32>
    %171 = arith.mulf %170, %170 : vector<16x32xf32>
    %cst_84 = arith.constant dense<0.000000e+00> : vector<16xf32>
    %172 = vector.multi_reduction <add>, %171, %cst_84 [1] : vector<16x32xf32> to vector<16xf32>
    %173 = vector.shape_cast %172 : vector<16xf32> to vector<16x1xf32>
    %cst_85 = arith.constant 3.200000e+01 : f32
    %174 = vector.broadcast %cst_85 : f32 to vector<16x1xf32>
    %175 = arith.divf %173, %174 : vector<16x1xf32>
    %176 = vector.broadcast %168 : vector<16x1xf32> to vector<16x32xf32>
    %177 = arith.subf %160, %176 : vector<16x32xf32>
    %cst_86 = arith.constant 9.99999974E-6 : f32
    %178 = vector.broadcast %cst_86 : f32 to vector<16x1xf32>
    %179 = arith.addf %175, %178 : vector<16x1xf32>
    %180 = math.rsqrt %179 : vector<16x1xf32>
    %181 = vector.broadcast %180 : vector<16x1xf32> to vector<16x32xf32>
    %182 = arith.mulf %177, %181 : vector<16x32xf32>
    %183 = vector.broadcast %162 : vector<1x32xf32> to vector<16x32xf32>
    %184 = arith.mulf %182, %183 : vector<16x32xf32>
    %185 = vector.broadcast %164 : vector<1x32xf32> to vector<16x32xf32>
    %186 = arith.addf %184, %185 : vector<16x32xf32>
    %c0_87 = arith.constant 0 : index
    %c0_88 = arith.constant 0 : index
    %187 = vector.load %arg19[%c0_87, %c0_88] : memref<16x32xf32, #tpu.memory_space<vmem>>, vector<16x32xf32>
    tpu.vector_store %arg19[%c0_87, %c0_88], %186 {strides = array<i32>} : memref<16x32xf32, #tpu.memory_space<vmem>>, vector<16x32xf32>,
    %c1_i32 = arith.constant 1 : i32
    %188 = arith.cmpi eq, %arg0, %c1_i32 : i32
    %189 = arith.extui %188 : i1 to i32
    %c0_i32_89 = arith.constant 0 : i32
    %190 = arith.cmpi ne, %189, %c0_i32_89 : i32
    scf.if %190 {
      %191 = vector.extract_strided_slice %186 {offsets = [0, 0], sizes = [4, 32], strides = [1, 1]} : vector<16x32xf32> to vector<4x32xf32>
      %192 = vector.extract_strided_slice %186 {offsets = [4, 0], sizes = [4, 32], strides = [1, 1]} : vector<16x32xf32> to vector<4x32xf32>
      %193 = vector.extract_strided_slice %186 {offsets = [8, 0], sizes = [4, 32], strides = [1, 1]} : vector<16x32xf32> to vector<4x32xf32>
      %194 = vector.extract_strided_slice %186 {offsets = [12, 0], sizes = [4, 32], strides = [1, 1]} : vector<16x32xf32> to vector<4x32xf32>
      %195 = tpu.concatenate %191, %192, %193, %194 in 1 : vector<4x32xf32>, vector<4x32xf32>, vector<4x32xf32>, vector<4x32xf32> -> vector<4x128xf32>
      %c0_90 = arith.constant 0 : index
      %c0_91 = arith.constant 0 : index
      %196 = vector.load %arg18[%c0_90, %c0_91] : memref<4x128xf32, #tpu.memory_space<vmem>>, vector<4x128xf32>
      tpu.vector_store %arg18[%c0_90, %c0_91], %195 {strides = array<i32>} : memref<4x128xf32, #tpu.memory_space<vmem>>, vector<4x128xf32>,
    } else {
    }
    return
  }
  func.func @transform_0(%arg0: i32) -> (i32, i32) {
    %c0_i32 = arith.constant 0 : i32
    %c0_i32_0 = arith.constant 0 : i32
    %c0_i32_1 = arith.constant 0 : i32
    return %c0_i32, %c0_i32_0 : i32, i32
  }
  func.func @transform_1(%arg0: i32) -> (i32, i32) {
    %c0_i32 = arith.constant 0 : i32
    %c0_i32_0 = arith.constant 0 : i32
    %c0_i32_1 = arith.constant 0 : i32
    return %c0_i32, %c0_i32_0 : i32, i32
  }
  func.func @transform_2(%arg0: i32) -> (i32, i32) {
    %c0_i32 = arith.constant 0 : i32
    %c0_i32_0 = arith.constant 0 : i32
    %c0_i32_1 = arith.constant 0 : i32
    return %c0_i32, %c0_i32_0 : i32, i32
  }
  func.func @transform_3(%arg0: i32) -> (i32, i32) {
    %c0_i32 = arith.constant 0 : i32
    %c0_i32_0 = arith.constant 0 : i32
    %c0_i32_1 = arith.constant 0 : i32
    return %c0_i32, %c0_i32_0 : i32, i32
  }
  func.func @transform_4(%arg0: i32) -> (i32, i32) {
    %c0_i32 = arith.constant 0 : i32
    %c0_i32_0 = arith.constant 0 : i32
    %c0_i32_1 = arith.constant 0 : i32
    return %c0_i32, %c0_i32_0 : i32, i32
  }
  func.func @transform_5(%arg0: i32) -> (i32, i32, i32) {
    %c0_i32 = arith.constant 0 : i32
    %c0_i32_0 = arith.constant 0 : i32
    %c0_i32_1 = arith.constant 0 : i32
    return %arg0, %c0_i32, %c0_i32_0 : i32, i32, i32
  }
  func.func @transform_6(%arg0: i32) -> (i32, i32, i32) {
    %c0_i32 = arith.constant 0 : i32
    %c0_i32_0 = arith.constant 0 : i32
    %c0_i32_1 = arith.constant 0 : i32
    return %arg0, %c0_i32, %c0_i32_0 : i32, i32, i32
  }
  func.func @transform_7(%arg0: i32) -> (i32, i32, i32) {
    %c0_i32 = arith.constant 0 : i32
    %c0_i32_0 = arith.constant 0 : i32
    %c0_i32_1 = arith.constant 0 : i32
    return %arg0, %c0_i32, %c0_i32_0 : i32, i32, i32
  }
  func.func @transform_8(%arg0: i32) -> (i32, i32, i32) {
    %c0_i32 = arith.constant 0 : i32
    %c0_i32_0 = arith.constant 0 : i32
    %c0_i32_1 = arith.constant 0 : i32
    return %arg0, %c0_i32, %c0_i32_0 : i32, i32, i32
  }
  func.func @transform_9(%arg0: i32) -> (i32, i32, i32) {
    %c0_i32 = arith.constant 0 : i32
    %c0_i32_0 = arith.constant 0 : i32
    %c0_i32_1 = arith.constant 0 : i32
    return %arg0, %c0_i32, %c0_i32_0 : i32, i32, i32
  }
  func.func @transform_10(%arg0: i32) -> (i32, i32, i32) {
    %c0_i32 = arith.constant 0 : i32
    %c0_i32_0 = arith.constant 0 : i32
    %c0_i32_1 = arith.constant 0 : i32
    return %arg0, %c0_i32, %c0_i32_0 : i32, i32, i32
  }
  func.func @transform_11(%arg0: i32) -> (i32, i32, i32) {
    %c0_i32 = arith.constant 0 : i32
    %c0_i32_0 = arith.constant 0 : i32
    %c0_i32_1 = arith.constant 0 : i32
    return %arg0, %c0_i32, %c0_i32_0 : i32, i32, i32
  }
  func.func @transform_12(%arg0: i32) -> (i32, i32, i32) {
    %c0_i32 = arith.constant 0 : i32
    %c0_i32_0 = arith.constant 0 : i32
    %c0_i32_1 = arith.constant 0 : i32
    return %arg0, %c0_i32, %c0_i32_0 : i32, i32, i32
  }
  func.func @transform_13(%arg0: i32) -> (i32, i32, i32) {
    %c0_i32 = arith.constant 0 : i32
    %c0_i32_0 = arith.constant 0 : i32
    %c0_i32_1 = arith.constant 0 : i32
    return %arg0, %c0_i32, %c0_i32_0 : i32, i32, i32
  }
  func.func @transform_14(%arg0: i32) -> (i32, i32, i32) {
    %c0_i32 = arith.constant 0 : i32
    %c0_i32_0 = arith.constant 0 : i32
    %c0_i32_1 = arith.constant 0 : i32
    return %arg0, %c0_i32, %c0_i32_0 : i32, i32, i32
  }
  func.func @transform_15(%arg0: i32) -> (i32, i32, i32) {
    %c0_i32 = arith.constant 0 : i32
    %c0_i32_0 = arith.constant 0 : i32
    %c0_i32_1 = arith.constant 0 : i32
    return %arg0, %c0_i32, %c0_i32_0 : i32, i32, i32
  }
  func.func @transform_16(%arg0: i32) -> (i32, i32, i32) {
    %c0_i32 = arith.constant 0 : i32
    %c0_i32_0 = arith.constant 0 : i32
    %c0_i32_1 = arith.constant 0 : i32
    return %arg0, %c0_i32, %c0_i32_0 : i32, i32, i32
  }
  func.func @transform_17(%arg0: i32) -> (i32, i32) {
    %c0_i32 = arith.constant 0 : i32
    %c0_i32_0 = arith.constant 0 : i32
    %c0_i32_1 = arith.constant 0 : i32
    return %c0_i32, %c0_i32_0 : i32, i32
  }
}

</mosaic_0001>

<llo_original>
// kernel: tpu_custom_call.1
$region0: #{tpu_custom_call.1}
  #allocation0 [shape = 'u32[]', space=smem, size = 0x4, offset = 0x4, fixed_abs, tag = 'smem constant byte address 0x4 - core index']
  #allocation1 [shape = 'u32[144,128]{1,0:T(1,128)}', space=vmem, size = 0x12000, scoped, tag = 'internal scratch']
  #allocation2 [shape = 'f32[16,32]{1,0:T(8,128)}', space=vmem, size = 0x2000, scoped, tag = 'scratch operand']
  %s0 = inlined_call_operand.vmem [shape: f32[16,32], index: 0, kind: input, shape index: {}]
  %s1 = inlined_call_operand.vmem [shape: f32[16,32], index: 1, kind: input, shape index: {}]
  %s2 = inlined_call_operand.vmem [shape: f32[16,16], index: 2, kind: input, shape index: {}]
  %s3 = inlined_call_operand.vmem [shape: f32[1,32], index: 3, kind: input, shape index: {}]
  %s4 = inlined_call_operand.vmem [shape: f32[1,32], index: 4, kind: input, shape index: {}]
  %s5 = inlined_call_operand.vmem [shape: f32[2,32,96], index: 5, kind: input, shape index: {}]
  %s6 = inlined_call_operand.vmem [shape: f32[2,1,96], index: 6, kind: input, shape index: {}]
  %s7 = inlined_call_operand.vmem [shape: f32[2,32,32], index: 7, kind: input, shape index: {}]
  %s8 = inlined_call_operand.vmem [shape: f32[2,1,32], index: 8, kind: input, shape index: {}]
  %s9 = inlined_call_operand.vmem [shape: f32[2,1,32], index: 9, kind: input, shape index: {}]
  %s10 = inlined_call_operand.vmem [shape: f32[2,1,32], index: 10, kind: input, shape index: {}]
  %s11 = inlined_call_operand.vmem [shape: f32[2,32,128], index: 11, kind: input, shape index: {}]
  %s12 = inlined_call_operand.vmem [shape: f32[2,1,128], index: 12, kind: input, shape index: {}]
  %s13 = inlined_call_operand.vmem [shape: f32[2,128,32], index: 13, kind: input, shape index: {}]
  %s14 = inlined_call_operand.vmem [shape: f32[2,1,32], index: 14, kind: input, shape index: {}]
  %s15 = inlined_call_operand.vmem [shape: f32[2,1,32], index: 15, kind: input, shape index: {}]
  %s16 = inlined_call_operand.vmem [shape: f32[2,1,32], index: 16, kind: input, shape index: {}]
  %s17 = inlined_call_operand.hbm [shape: f32[4,128], index: 17, kind: output, shape index: {}]
  %s18 = sld [smem:[#allocation0]]
  $region109: #{tpu_custom_call.1} parent=0
    _
  %s20 = ssub.s32 1, %s18
  %s21 = scalar_select 0, %s20, %s18
  $region1: #{tpu_custom_call.1} parent=0
    #allocation3 [shape = 'u8[2048]{0}', space=vmem, size = 0x800, scoped, tag = 'output window, operand 0, single buffered']
    #allocation4 [shape = 's32[2]{0}', space=sflag, size = 0x8, scoped, tag = 'scoped memory for tpu_custom_call.1']
    %22 = vsyncpa [#allocation4], 0
    loop: start=0, step=1, limit=4
    $region2: #{tpu_custom_call.1} parent=1 // loop_pre_header
      _
    $region3: #{tpu_custom_call.1} parent=1 // loop_header
      %s24 = sphi 0, %s28
      %p25 = scmp.ge.s32.totalorder %s24, 4
      %s32 = sphi 0, %s32
      %s34 = sphi 0, %s32
      %s35 = sphi 0, %s34
      %s49 = sphi 0, %s35
      %s53 = sphi 0, %s53
      %s55 = sphi 0, %s53
      %s56 = sphi 0, %s55
      %s70 = sphi 0, %s56
      %s74 = sphi 0, %s74
      %s76 = sphi 0, %s74
      %s77 = sphi 0, %s76
      %s91 = sphi 0, %s77
      %s95 = sphi 0, %s95
      %s97 = sphi 0, %s95
      %s98 = sphi 0, %s97
      %s112 = sphi 0, %s98
      %s116 = sphi 0, %s116
      %s118 = sphi 0, %s116
      %s119 = sphi 0, %s118
      %s133 = sphi 0, %s119
      %s139 = sphi 0, %s141
      %s142 = sphi 0, %s139
      %s143 = sphi 0, %s142
      %s159 = sphi 0, %s143
      %s165 = sphi 0, %s167
      %s168 = sphi 0, %s165
      %s169 = sphi 0, %s168
      %s185 = sphi 0, %s169
      %s191 = sphi 0, %s193
      %s194 = sphi 0, %s191
      %s195 = sphi 0, %s194
      %s211 = sphi 0, %s195
      %s217 = sphi 0, %s219
      %s220 = sphi 0, %s217
      %s221 = sphi 0, %s220
      %s237 = sphi 0, %s221
      %s243 = sphi 0, %s245
      %s246 = sphi 0, %s243
      %s247 = sphi 0, %s246
      %s263 = sphi 0, %s247
      %s269 = sphi 0, %s271
      %s272 = sphi 0, %s269
      %s273 = sphi 0, %s272
      %s289 = sphi 0, %s273
      %s295 = sphi 0, %s297
      %s298 = sphi 0, %s295
      %s299 = sphi 0, %s298
      %s315 = sphi 0, %s299
      %s321 = sphi 0, %s323
      %s324 = sphi 0, %s321
      %s325 = sphi 0, %s324
      %s341 = sphi 0, %s325
      %s347 = sphi 0, %s349
      %s350 = sphi 0, %s347
      %s351 = sphi 0, %s350
      %s367 = sphi 0, %s351
      %s373 = sphi 0, %s375
      %s376 = sphi 0, %s373
      %s377 = sphi 0, %s376
      %s393 = sphi 0, %s377
      %s399 = sphi 0, %s401
      %s402 = sphi 0, %s399
      %s403 = sphi 0, %s402
      %s419 = sphi 0, %s403
      %s425 = sphi 0, %s427
      %s428 = sphi 0, %s425
      %s429 = sphi 0, %s428
      %s445 = sphi 0, %s429
      %s449 = sphi 0, %s449
      %s451 = sphi 0, %s449
      %s452 = sphi 0, %s451
      %s466 = sphi 0, %s452
    $region4: #{tpu_custom_call.1} parent=1 // loop_header_branch
      %27 = sbr.rel (%p25) target = $region8
    $region5: #{tpu_custom_call.1} parent=1 // loop_body
      %s29 = ssub.s32 %s24, 1
      %s30 = ssub.s32 %s24, 2
      %s31 = sadd.s32 %s24, 1
      %s33 = sadd.s32 %s32, 1
      %p36 = scmp.eq.s32.totalorder %s24, 1
      %p37 = scmp.ne.s32.totalorder %s32, %s34
      %p38 = scmp.eq.s32.totalorder %s24, 0
      %p39 = por %p37, %p38
      %p40 = scmp.ne.s32.totalorder %s32, %s34
      %p41 = scmp.eq.s32.totalorder %s29, 1
      %p42 = por %p40, %p41
      %p43 = scmp.ne.s32.totalorder %s34, %s35
      %p44 = scmp.eq.s32.totalorder %s29, 0
      %p45 = por %p43, %p44
      %p46 = scmp.ne.s32.totalorder %s34, %s35
      %p47 = scmp.eq.s32.totalorder %s30, 1
      %p48 = por %p46, %p47
      %p50 = scmp.ne.s32.totalorder %s35, %s49
      %p51 = scmp.eq.s32.totalorder %s30, 0
      %p52 = por %p50, %p51
      %s54 = sadd.s32 %s53, 1
      %p57 = scmp.eq.s32.totalorder %s24, 1
      %p58 = scmp.ne.s32.totalorder %s53, %s55
      %p59 = scmp.eq.s32.totalorder %s24, 0
      %p60 = por %p58, %p59
      %p61 = scmp.ne.s32.totalorder %s53, %s55
      %p62 = scmp.eq.s32.totalorder %s29, 1
      %p63 = por %p61, %p62
      %p64 = scmp.ne.s32.totalorder %s55, %s56
      %p65 = scmp.eq.s32.totalorder %s29, 0
      %p66 = por %p64, %p65
      %p67 = scmp.ne.s32.totalorder %s55, %s56
      %p68 = scmp.eq.s32.totalorder %s30, 1
      %p69 = por %p67, %p68
      %p71 = scmp.ne.s32.totalorder %s56, %s70
      %p72 = scmp.eq.s32.totalorder %s30, 0
      %p73 = por %p71, %p72
      %s75 = sadd.s32 %s74, 1
      %p78 = scmp.eq.s32.totalorder %s24, 1
      %p79 = scmp.ne.s32.totalorder %s74, %s76
      %p80 = scmp.eq.s32.totalorder %s24, 0
      %p81 = por %p79, %p80
      %p82 = scmp.ne.s32.totalorder %s74, %s76
      %p83 = scmp.eq.s32.totalorder %s29, 1
      %p84 = por %p82, %p83
      %p85 = scmp.ne.s32.totalorder %s76, %s77
      %p86 = scmp.eq.s32.totalorder %s29, 0
      %p87 = por %p85, %p86
      %p88 = scmp.ne.s32.totalorder %s76, %s77
      %p89 = scmp.eq.s32.totalorder %s30, 1
      %p90 = por %p88, %p89
      %p92 = scmp.ne.s32.totalorder %s77, %s91
      %p93 = scmp.eq.s32.totalorder %s30, 0
      %p94 = por %p92, %p93
      %s96 = sadd.s32 %s95, 1
      %p99 = scmp.eq.s32.totalorder %s24, 1
      %p100 = scmp.ne.s32.totalorder %s95, %s97
      %p101 = scmp.eq.s32.totalorder %s24, 0
      %p102 = por %p100, %p101
      %p103 = scmp.ne.s32.totalorder %s95, %s97
      %p104 = scmp.eq.s32.totalorder %s29, 1
      %p105 = por %p103, %p104
      %p106 = scmp.ne.s32.totalorder %s97, %s98
      %p107 = scmp.eq.s32.totalorder %s29, 0
      %p108 = por %p106, %p107
      %p109 = scmp.ne.s32.totalorder %s97, %s98
      %p110 = scmp.eq.s32.totalorder %s30, 1
      %p111 = por %p109, %p110
      %p113 = scmp.ne.s32.totalorder %s98, %s112
      %p114 = scmp.eq.s32.totalorder %s30, 0
      %p115 = por %p113, %p114
      %s117 = sadd.s32 %s116, 1
      %p120 = scmp.eq.s32.totalorder %s24, 1
      %p121 = scmp.ne.s32.totalorder %s116, %s118
      %p122 = scmp.eq.s32.totalorder %s24, 0
      %p123 = por %p121, %p122
      %p124 = scmp.ne.s32.totalorder %s116, %s118
      %p125 = scmp.eq.s32.totalorder %s29, 1
      %p126 = por %p124, %p125
      %p127 = scmp.ne.s32.totalorder %s118, %s119
      %p128 = scmp.eq.s32.totalorder %s29, 0
      %p129 = por %p127, %p128
      %p130 = scmp.ne.s32.totalorder %s118, %s119
      %p131 = scmp.eq.s32.totalorder %s30, 1
      %p132 = por %p130, %p131
      %p134 = scmp.ne.s32.totalorder %s119, %s133
      %p135 = scmp.eq.s32.totalorder %s30, 0
      %p136 = por %p134, %p135
      %s137 = ssub.s32 %s24, %s31
      %p138 = scmp.eq.s32.totalorder %s137, 0
      %s140 = sadd.s32 %s139, 1
      %s141 = scalar_select %p138, %s139, %s140
      %p144 = pneg %p138
      %p145 = scmp.eq.s32.totalorder %s24, 1
      %p146 = por %p144, %p145
      %p147 = scmp.ne.s32.totalorder %s139, %s142
      %p148 = scmp.eq.s32.totalorder %s24, 0
      %p149 = por %p147, %p148
      %p150 = scmp.ne.s32.totalorder %s139, %s142
      %p151 = scmp.eq.s32.totalorder %s29, 1
      %p152 = por %p150, %p151
      %p153 = scmp.ne.s32.totalorder %s142, %s143
      %p154 = scmp.eq.s32.totalorder %s29, 0
      %p155 = por %p153, %p154
      %p156 = scmp.ne.s32.totalorder %s142, %s143
      %p157 = scmp.eq.s32.totalorder %s30, 1
      %p158 = por %p156, %p157
      %p160 = scmp.ne.s32.totalorder %s143, %s159
      %p161 = scmp.eq.s32.totalorder %s30, 0
      %p162 = por %p160, %p161
      %s163 = ssub.s32 %s24, %s31
      %p164 = scmp.eq.s32.totalorder %s163, 0
      %s166 = sadd.s32 %s165, 1
      %s167 = scalar_select %p164, %s165, %s166
      %p170 = pneg %p164
      %p171 = scmp.eq.s32.totalorder %s24, 1
      %p172 = por %p170, %p171
      %p173 = scmp.ne.s32.totalorder %s165, %s168
      %p174 = scmp.eq.s32.totalorder %s24, 0
      %p175 = por %p173, %p174
      %p176 = scmp.ne.s32.totalorder %s165, %s168
      %p177 = scmp.eq.s32.totalorder %s29, 1
      %p178 = por %p176, %p177
      %p179 = scmp.ne.s32.totalorder %s168, %s169
      %p180 = scmp.eq.s32.totalorder %s29, 0
      %p181 = por %p179, %p180
      %p182 = scmp.ne.s32.totalorder %s168, %s169
      %p183 = scmp.eq.s32.totalorder %s30, 1
      %p184 = por %p182, %p183
      %p186 = scmp.ne.s32.totalorder %s169, %s185
      %p187 = scmp.eq.s32.totalorder %s30, 0
      %p188 = por %p186, %p187
      %s189 = ssub.s32 %s24, %s31
      %p190 = scmp.eq.s32.totalorder %s189, 0
      %s192 = sadd.s32 %s191, 1
      %s193 = scalar_select %p190, %s191, %s192
      %p196 = pneg %p190
      %p197 = scmp.eq.s32.totalorder %s24, 1
      %p198 = por %p196, %p197
      %p199 = scmp.ne.s32.totalorder %s191, %s194
      %p200 = scmp.eq.s32.totalorder %s24, 0
      %p201 = por %p199, %p200
      %p202 = scmp.ne.s32.totalorder %s191, %s194
      %p203 = scmp.eq.s32.totalorder %s29, 1
      %p204 = por %p202, %p203
      %p205 = scmp.ne.s32.totalorder %s194, %s195
      %p206 = scmp.eq.s32.totalorder %s29, 0
      %p207 = por %p205, %p206
      %p208 = scmp.ne.s32.totalorder %s194, %s195
      %p209 = scmp.eq.s32.totalorder %s30, 1
      %p210 = por %p208, %p209
      %p212 = scmp.ne.s32.totalorder %s195, %s211
      %p213 = scmp.eq.s32.totalorder %s30, 0
      %p214 = por %p212, %p213
      %s215 = ssub.s32 %s24, %s31
      %p216 = scmp.eq.s32.totalorder %s215, 0
      %s218 = sadd.s32 %s217, 1
      %s219 = scalar_select %p216, %s217, %s218
      %p222 = pneg %p216
      %p223 = scmp.eq.s32.totalorder %s24, 1
      %p224 = por %p222, %p223
      %p225 = scmp.ne.s32.totalorder %s217, %s220
      %p226 = scmp.eq.s32.totalorder %s24, 0
      %p227 = por %p225, %p226
      %p228 = scmp.ne.s32.totalorder %s217, %s220
      %p229 = scmp.eq.s32.totalorder %s29, 1
      %p230 = por %p228, %p229
      %p231 = scmp.ne.s32.totalorder %s220, %s221
      %p232 = scmp.eq.s32.totalorder %s29, 0
      %p233 = por %p231, %p232
      %p234 = scmp.ne.s32.totalorder %s220, %s221
      %p235 = scmp.eq.s32.totalorder %s30, 1
      %p236 = por %p234, %p235
      %p238 = scmp.ne.s32.totalorder %s221, %s237
      %p239 = scmp.eq.s32.totalorder %s30, 0
      %p240 = por %p238, %p239
      %s241 = ssub.s32 %s24, %s31
      %p242 = scmp.eq.s32.totalorder %s241, 0
      %s244 = sadd.s32 %s243, 1
      %s245 = scalar_select %p242, %s243, %s244
      %p248 = pneg %p242
      %p249 = scmp.eq.s32.totalorder %s24, 1
      %p250 = por %p248, %p249
      %p251 = scmp.ne.s32.totalorder %s243, %s246
      %p252 = scmp.eq.s32.totalorder %s24, 0
      %p253 = por %p251, %p252
      %p254 = scmp.ne.s32.totalorder %s243, %s246
      %p255 = scmp.eq.s32.totalorder %s29, 1
      %p256 = por %p254, %p255
      %p257 = scmp.ne.s32.totalorder %s246, %s247
      %p258 = scmp.eq.s32.totalorder %s29, 0
      %p259 = por %p257, %p258
      %p260 = scmp.ne.s32.totalorder %s246, %s247
      %p261 = scmp.eq.s32.totalorder %s30, 1
      %p262 = por %p260, %p261
      %p264 = scmp.ne.s32.totalorder %s247, %s263
      %p265 = scmp.eq.s32.totalorder %s30, 0
      %p266 = por %p264, %p265
      %s267 = ssub.s32 %s24, %s31
      %p268 = scmp.eq.s32.totalorder %s267, 0
      %s270 = sadd.s32 %s269, 1
      %s271 = scalar_select %p268, %s269, %s270
      %p274 = pneg %p268
      %p275 = scmp.eq.s32.totalorder %s24, 1
      %p276 = por %p274, %p275
      %p277 = scmp.ne.s32.totalorder %s269, %s272
      %p278 = scmp.eq.s32.totalorder %s24, 0
      %p279 = por %p277, %p278
      %p280 = scmp.ne.s32.totalorder %s269, %s272
      %p281 = scmp.eq.s32.totalorder %s29, 1
      %p282 = por %p280, %p281
      %p283 = scmp.ne.s32.totalorder %s272, %s273
      %p284 = scmp.eq.s32.totalorder %s29, 0
      %p285 = por %p283, %p284
      %p286 = scmp.ne.s32.totalorder %s272, %s273
      %p287 = scmp.eq.s32.totalorder %s30, 1
      %p288 = por %p286, %p287
      %p290 = scmp.ne.s32.totalorder %s273, %s289
      %p291 = scmp.eq.s32.totalorder %s30, 0
      %p292 = por %p290, %p291
      %s293 = ssub.s32 %s24, %s31
      %p294 = scmp.eq.s32.totalorder %s293, 0
      %s296 = sadd.s32 %s295, 1
      %s297 = scalar_select %p294, %s295, %s296
      %p300 = pneg %p294
      %p301 = scmp.eq.s32.totalorder %s24, 1
      %p302 = por %p300, %p301
      %p303 = scmp.ne.s32.totalorder %s295, %s298
      %p304 = scmp.eq.s32.totalorder %s24, 0
      %p305 = por %p303, %p304
      %p306 = scmp.ne.s32.totalorder %s295, %s298
      %p307 = scmp.eq.s32.totalorder %s29, 1
      %p308 = por %p306, %p307
      %p309 = scmp.ne.s32.totalorder %s298, %s299
      %p310 = scmp.eq.s32.totalorder %s29, 0
      %p311 = por %p309, %p310
      %p312 = scmp.ne.s32.totalorder %s298, %s299
      %p313 = scmp.eq.s32.totalorder %s30, 1
      %p314 = por %p312, %p313
      %p316 = scmp.ne.s32.totalorder %s299, %s315
      %p317 = scmp.eq.s32.totalorder %s30, 0
      %p318 = por %p316, %p317
      %s319 = ssub.s32 %s24, %s31
      %p320 = scmp.eq.s32.totalorder %s319, 0
      %s322 = sadd.s32 %s321, 1
      %s323 = scalar_select %p320, %s321, %s322
      %p326 = pneg %p320
      %p327 = scmp.eq.s32.totalorder %s24, 1
      %p328 = por %p326, %p327
      %p329 = scmp.ne.s32.totalorder %s321, %s324
      %p330 = scmp.eq.s32.totalorder %s24, 0
      %p331 = por %p329, %p330
      %p332 = scmp.ne.s32.totalorder %s321, %s324
      %p333 = scmp.eq.s32.totalorder %s29, 1
      %p334 = por %p332, %p333
      %p335 = scmp.ne.s32.totalorder %s324, %s325
      %p336 = scmp.eq.s32.totalorder %s29, 0
      %p337 = por %p335, %p336
      %p338 = scmp.ne.s32.totalorder %s324, %s325
      %p339 = scmp.eq.s32.totalorder %s30, 1
      %p340 = por %p338, %p339
      %p342 = scmp.ne.s32.totalorder %s325, %s341
      %p343 = scmp.eq.s32.totalorder %s30, 0
      %p344 = por %p342, %p343
      %s345 = ssub.s32 %s24, %s31
      %p346 = scmp.eq.s32.totalorder %s345, 0
      %s348 = sadd.s32 %s347, 1
      %s349 = scalar_select %p346, %s347, %s348
      %p352 = pneg %p346
      %p353 = scmp.eq.s32.totalorder %s24, 1
      %p354 = por %p352, %p353
      %p355 = scmp.ne.s32.totalorder %s347, %s350
      %p356 = scmp.eq.s32.totalorder %s24, 0
      %p357 = por %p355, %p356
      %p358 = scmp.ne.s32.totalorder %s347, %s350
      %p359 = scmp.eq.s32.totalorder %s29, 1
      %p360 = por %p358, %p359
      %p361 = scmp.ne.s32.totalorder %s350, %s351
      %p362 = scmp.eq.s32.totalorder %s29, 0
      %p363 = por %p361, %p362
      %p364 = scmp.ne.s32.totalorder %s350, %s351
      %p365 = scmp.eq.s32.totalorder %s30, 1
      %p366 = por %p364, %p365
      %p368 = scmp.ne.s32.totalorder %s351, %s367
      %p369 = scmp.eq.s32.totalorder %s30, 0
      %p370 = por %p368, %p369
      %s371 = ssub.s32 %s24, %s31
      %p372 = scmp.eq.s32.totalorder %s371, 0
      %s374 = sadd.s32 %s373, 1
      %s375 = scalar_select %p372, %s373, %s374
      %p378 = pneg %p372
      %p379 = scmp.eq.s32.totalorder %s24, 1
      %p380 = por %p378, %p379
      %p381 = scmp.ne.s32.totalorder %s373, %s376
      %p382 = scmp.eq.s32.totalorder %s24, 0
      %p383 = por %p381, %p382
      %p384 = scmp.ne.s32.totalorder %s373, %s376
      %p385 = scmp.eq.s32.totalorder %s29, 1
      %p386 = por %p384, %p385
      %p387 = scmp.ne.s32.totalorder %s376, %s377
      %p388 = scmp.eq.s32.totalorder %s29, 0
      %p389 = por %p387, %p388
      %p390 = scmp.ne.s32.totalorder %s376, %s377
      %p391 = scmp.eq.s32.totalorder %s30, 1
      %p392 = por %p390, %p391
      %p394 = scmp.ne.s32.totalorder %s377, %s393
      %p395 = scmp.eq.s32.totalorder %s30, 0
      %p396 = por %p394, %p395
      %s397 = ssub.s32 %s24, %s31
      %p398 = scmp.eq.s32.totalorder %s397, 0
      %s400 = sadd.s32 %s399, 1
      %s401 = scalar_select %p398, %s399, %s400
      %p404 = pneg %p398
      %p405 = scmp.eq.s32.totalorder %s24, 1
      %p406 = por %p404, %p405
      %p407 = scmp.ne.s32.totalorder %s399, %s402
      %p408 = scmp.eq.s32.totalorder %s24, 0
      %p409 = por %p407, %p408
      %p410 = scmp.ne.s32.totalorder %s399, %s402
      %p411 = scmp.eq.s32.totalorder %s29, 1
      %p412 = por %p410, %p411
      %p413 = scmp.ne.s32.totalorder %s402, %s403
      %p414 = scmp.eq.s32.totalorder %s29, 0
      %p415 = por %p413, %p414
      %p416 = scmp.ne.s32.totalorder %s402, %s403
      %p417 = scmp.eq.s32.totalorder %s30, 1
      %p418 = por %p416, %p417
      %p420 = scmp.ne.s32.totalorder %s403, %s419
      %p421 = scmp.eq.s32.totalorder %s30, 0
      %p422 = por %p420, %p421
      %s423 = ssub.s32 %s24, %s31
      %p424 = scmp.eq.s32.totalorder %s423, 0
      %s426 = sadd.s32 %s425, 1
      %s427 = scalar_select %p424, %s425, %s426
      %p430 = pneg %p424
      %p431 = scmp.eq.s32.totalorder %s24, 1
      %p432 = por %p430, %p431
      %p433 = scmp.ne.s32.totalorder %s425, %s428
      %p434 = scmp.eq.s32.totalorder %s24, 0
      %p435 = por %p433, %p434
      %p436 = scmp.ne.s32.totalorder %s425, %s428
      %p437 = scmp.eq.s32.totalorder %s29, 1
      %p438 = por %p436, %p437
      %p439 = scmp.ne.s32.totalorder %s428, %s429
      %p440 = scmp.eq.s32.totalorder %s29, 0
      %p441 = por %p439, %p440
      %p442 = scmp.ne.s32.totalorder %s428, %s429
      %p443 = scmp.eq.s32.totalorder %s30, 1
      %p444 = por %p442, %p443
      %p446 = scmp.ne.s32.totalorder %s429, %s445
      %p447 = scmp.eq.s32.totalorder %s30, 0
      %p448 = por %p446, %p447
      %s450 = sadd.s32 %s449, 1
      %p453 = scmp.eq.s32.totalorder %s24, 1
      %p454 = scmp.ne.s32.totalorder %s449, %s451
      %p455 = scmp.eq.s32.totalorder %s24, 0
      %p456 = por %p454, %p455
      %p457 = scmp.ne.s32.totalorder %s449, %s451
      %p458 = scmp.eq.s32.totalorder %s29, 1
      %p459 = por %p457, %p458
      %p460 = scmp.ne.s32.totalorder %s451, %s452
      %p461 = scmp.eq.s32.totalorder %s29, 0
      %p462 = por %p460, %p461
      %p463 = scmp.ne.s32.totalorder %s451, %s452
      %p464 = scmp.eq.s32.totalorder %s30, 1
      %p465 = por %p463, %p464
      %p467 = scmp.ne.s32.totalorder %s452, %s466
      %p468 = scmp.eq.s32.totalorder %s30, 0
      %p469 = por %p467, %p468
      %p470 = scmp.le.s32.totalorder 1, %s24
      %p471 = scmp.lt.s32.totalorder %s24, 3
      %p472 = pnand %p470, %p471
      %p473 = pneg %p472
      // Predicated region
      $region9: #{tpu_custom_call.1} parent=5 // pred_check
        _
      $region10: #{tpu_custom_call.1} parent=5 // pred_check_branch
        %475 = sbr.rel (%p472) target = $region12
      $region11: #{tpu_custom_call.1} parent=5 // pred_region
        %s476 = ssub.s32 %s24, 1
        // Predicated region
        $region13: #{tpu_custom_call.1} parent=11 // pred_check
          %p477 = pneg %p45
        $region14: #{tpu_custom_call.1} parent=11 // pred_check_branch
          %479 = sbr.rel (%p477) target = $region16
        $region15: #{tpu_custom_call.1} parent=11 // pred_region
          _
        $region16: #{tpu_custom_call.1} parent=11 // pred_fallthru
          _
        // Predicated region
        $region17: #{tpu_custom_call.1} parent=11 // pred_check
          %p480 = pneg %p66
        $region18: #{tpu_custom_call.1} parent=11 // pred_check_branch
          %482 = sbr.rel (%p480) target = $region20
        $region19: #{tpu_custom_call.1} parent=11 // pred_region
          _
        $region20: #{tpu_custom_call.1} parent=11 // pred_fallthru
          _
        // Predicated region
        $region21: #{tpu_custom_call.1} parent=11 // pred_check
          %p483 = pneg %p87
        $region22: #{tpu_custom_call.1} parent=11 // pred_check_branch
          %485 = sbr.rel (%p483) target = $region24
        $region23: #{tpu_custom_call.1} parent=11 // pred_region
          _
        $region24: #{tpu_custom_call.1} parent=11 // pred_fallthru
          _
        // Predicated region
        $region25: #{tpu_custom_call.1} parent=11 // pred_check
          %p486 = pneg %p108
        $region26: #{tpu_custom_call.1} parent=11 // pred_check_branch
          %488 = sbr.rel (%p486) target = $region28
        $region27: #{tpu_custom_call.1} parent=11 // pred_region
          _
        $region28: #{tpu_custom_call.1} parent=11 // pred_fallthru
          _
        // Predicated region
        $region29: #{tpu_custom_call.1} parent=11 // pred_check
          %p489 = pneg %p129
        $region30: #{tpu_custom_call.1} parent=11 // pred_check_branch
          %491 = sbr.rel (%p489) target = $region32
        $region31: #{tpu_custom_call.1} parent=11 // pred_region
          _
        $region32: #{tpu_custom_call.1} parent=11 // pred_fallthru
          _
      $region12: #{tpu_custom_call.1} parent=5 // pred_fallthru
        _
      %p492 = scmp.lt.s32.totalorder %s24, 2
      // Predicated region
      $region33: #{tpu_custom_call.1} parent=5 // pred_check
        %p493 = pneg %p492
      $region34: #{tpu_custom_call.1} parent=5 // pred_check_branch
        %495 = sbr.rel (%p493) target = $region36
      $region35: #{tpu_custom_call.1} parent=5 // pred_region
        // Predicated region
        $region37: #{tpu_custom_call.1} parent=35 // pred_check
          %p496 = pneg %p149
        $region38: #{tpu_custom_call.1} parent=35 // pred_check_branch
          %498 = sbr.rel (%p496) target = $region40
        $region39: #{tpu_custom_call.1} parent=35 // pred_region
          %p499 = scmp.lt.s32.totalorder %s24, 1
          %s500 = scalar_select %p499, %s24, 1
          %s501 = smul.addr %s500, 4
          %s502 = smul.addr %s501, 8
          %s503 = scalar_lea.vmem %s5, %s502
        $region40: #{tpu_custom_call.1} parent=35 // pred_fallthru
          _
        // Predicated region
        $region41: #{tpu_custom_call.1} parent=35 // pred_check
          %p504 = pneg %p175
        $region42: #{tpu_custom_call.1} parent=35 // pred_check_branch
          %506 = sbr.rel (%p504) target = $region44
        $region43: #{tpu_custom_call.1} parent=35 // pred_region
          %p507 = scmp.lt.s32.totalorder %s24, 1
          %s508 = scalar_select %p507, %s24, 1
          %s509 = scalar_lea.vmem %s6, %s508
        $region44: #{tpu_custom_call.1} parent=35 // pred_fallthru
          _
        // Predicated region
        $region45: #{tpu_custom_call.1} parent=35 // pred_check
          %p510 = pneg %p201
        $region46: #{tpu_custom_call.1} parent=35 // pred_check_branch
          %512 = sbr.rel (%p510) target = $region48
        $region47: #{tpu_custom_call.1} parent=35 // pred_region
          %p513 = scmp.lt.s32.totalorder %s24, 1
          %s514 = scalar_select %p513, %s24, 1
          %s515 = smul.addr %s514, 4
          %s516 = smul.addr %s515, 8
          %s517 = scalar_lea.vmem %s7, %s516
        $region48: #{tpu_custom_call.1} parent=35 // pred_fallthru
          _
        // Predicated region
        $region49: #{tpu_custom_call.1} parent=35 // pred_check
          %p518 = pneg %p227
        $region50: #{tpu_custom_call.1} parent=35 // pred_check_branch
          %520 = sbr.rel (%p518) target = $region52
        $region51: #{tpu_custom_call.1} parent=35 // pred_region
          %p521 = scmp.lt.s32.totalorder %s24, 1
          %s522 = scalar_select %p521, %s24, 1
          %s523 = scalar_lea.vmem %s8, %s522
        $region52: #{tpu_custom_call.1} parent=35 // pred_fallthru
          _
        // Predicated region
        $region53: #{tpu_custom_call.1} parent=35 // pred_check
          %p524 = pneg %p253
        $region54: #{tpu_custom_call.1} parent=35 // pred_check_branch
          %526 = sbr.rel (%p524) target = $region56
        $region55: #{tpu_custom_call.1} parent=35 // pred_region
          %p527 = scmp.lt.s32.totalorder %s24, 1
          %s528 = scalar_select %p527, %s24, 1
          %s529 = scalar_lea.vmem %s9, %s528
        $region56: #{tpu_custom_call.1} parent=35 // pred_fallthru
          _
        // Predicated region
        $region57: #{tpu_custom_call.1} parent=35 // pred_check
          %p530 = pneg %p279
        $region58: #{tpu_custom_call.1} parent=35 // pred_check_branch
          %532 = sbr.rel (%p530) target = $region60
        $region59: #{tpu_custom_call.1} parent=35 // pred_region
          %p533 = scmp.lt.s32.totalorder %s24, 1
          %s534 = scalar_select %p533, %s24, 1
          %s535 = scalar_lea.vmem %s10, %s534
        $region60: #{tpu_custom_call.1} parent=35 // pred_fallthru
          _
        // Predicated region
        $region61: #{tpu_custom_call.1} parent=35 // pred_check
          %p536 = pneg %p305
        $region62: #{tpu_custom_call.1} parent=35 // pred_check_branch
          %538 = sbr.rel (%p536) target = $region64
        $region63: #{tpu_custom_call.1} parent=35 // pred_region
          %p539 = scmp.lt.s32.totalorder %s24, 1
          %s540 = scalar_select %p539, %s24, 1
          %s541 = smul.addr %s540, 4
          %s542 = smul.addr %s541, 8
          %s543 = scalar_lea.vmem %s11, %s542
        $region64: #{tpu_custom_call.1} parent=35 // pred_fallthru
          _
        // Predicated region
        $region65: #{tpu_custom_call.1} parent=35 // pred_check
          %p544 = pneg %p331
        $region66: #{tpu_custom_call.1} parent=35 // pred_check_branch
          %546 = sbr.rel (%p544) target = $region68
        $region67: #{tpu_custom_call.1} parent=35 // pred_region
          %p547 = scmp.lt.s32.totalorder %s24, 1
          %s548 = scalar_select %p547, %s24, 1
          %s549 = scalar_lea.vmem %s12, %s548
        $region68: #{tpu_custom_call.1} parent=35 // pred_fallthru
          _
        // Predicated region
        $region69: #{tpu_custom_call.1} parent=35 // pred_check
          %p550 = pneg %p357
        $region70: #{tpu_custom_call.1} parent=35 // pred_check_branch
          %552 = sbr.rel (%p550) target = $region72
        $region71: #{tpu_custom_call.1} parent=35 // pred_region
          %p553 = scmp.lt.s32.totalorder %s24, 1
          %s554 = scalar_select %p553, %s24, 1
          %s555 = smul.addr %s554, 16
          %s556 = smul.addr %s555, 8
          %s557 = scalar_lea.vmem %s13, %s556
        $region72: #{tpu_custom_call.1} parent=35 // pred_fallthru
          _
        // Predicated region
        $region73: #{tpu_custom_call.1} parent=35 // pred_check
          %p558 = pneg %p383
        $region74: #{tpu_custom_call.1} parent=35 // pred_check_branch
          %560 = sbr.rel (%p558) target = $region76
        $region75: #{tpu_custom_call.1} parent=35 // pred_region
          %p561 = scmp.lt.s32.totalorder %s24, 1
          %s562 = scalar_select %p561, %s24, 1
          %s563 = scalar_lea.vmem %s14, %s562
        $region76: #{tpu_custom_call.1} parent=35 // pred_fallthru
          _
        // Predicated region
        $region77: #{tpu_custom_call.1} parent=35 // pred_check
          %p564 = pneg %p409
        $region78: #{tpu_custom_call.1} parent=35 // pred_check_branch
          %566 = sbr.rel (%p564) target = $region80
        $region79: #{tpu_custom_call.1} parent=35 // pred_region
          %p567 = scmp.lt.s32.totalorder %s24, 1
          %s568 = scalar_select %p567, %s24, 1
          %s569 = scalar_lea.vmem %s15, %s568
        $region80: #{tpu_custom_call.1} parent=35 // pred_fallthru
          _
        // Predicated region
        $region81: #{tpu_custom_call.1} parent=35 // pred_check
          %p570 = pneg %p435
        $region82: #{tpu_custom_call.1} parent=35 // pred_check_branch
          %572 = sbr.rel (%p570) target = $region84
        $region83: #{tpu_custom_call.1} parent=35 // pred_region
          %p573 = scmp.lt.s32.totalorder %s24, 1
          %s574 = scalar_select %p573, %s24, 1
          %s575 = scalar_lea.vmem %s16, %s574
        $region84: #{tpu_custom_call.1} parent=35 // pred_fallthru
          _
      $region36: #{tpu_custom_call.1} parent=5 // pred_fallthru
        _
      %p576 = scmp.le.s32.totalorder 1, %s24
      %p577 = scmp.lt.s32.totalorder %s24, 3
      %p578 = pnand %p576, %p577
      %p579 = pneg %p578
      // Predicated region
      $region85: #{tpu_custom_call.1} parent=5 // pred_check
        _
      $region86: #{tpu_custom_call.1} parent=5 // pred_check_branch
        %581 = sbr.rel (%p578) target = $region88
      $region87: #{tpu_custom_call.1} parent=5 // pred_region
        %s582 = ssub.s32 %s24, 1
        %p583 = pneg %p45
        %p584 = pneg %p42
        %p585 = pneg %p66
        %p586 = pneg %p63
        %p587 = pneg %p87
        %p588 = pneg %p84
        %p589 = pneg %p108
        %p590 = pneg %p105
        %p591 = pneg %p129
        %p592 = pneg %p126
        %p593 = scmp.lt.s32.totalorder %s29, 1
        %s594 = scalar_select %p593, %s29, 1
        %s595 = smul.addr %s594, 4
        %s596 = smul.addr %s595, 8
        %s597 = scalar_lea.vmem %s5, %s596
        %p598 = pneg %p155
        %p599 = pneg %p152
        %p600 = scmp.lt.s32.totalorder %s29, 1
        %s601 = scalar_select %p600, %s29, 1
        %s602 = scalar_lea.vmem %s6, %s601
        %p603 = pneg %p181
        %p604 = pneg %p178
        %p605 = scmp.lt.s32.totalorder %s29, 1
        %s606 = scalar_select %p605, %s29, 1
        %s607 = smul.addr %s606, 4
        %s608 = smul.addr %s607, 8
        %s609 = scalar_lea.vmem %s7, %s608
        %p610 = pneg %p207
        %p611 = pneg %p204
        %p612 = scmp.lt.s32.totalorder %s29, 1
        %s613 = scalar_select %p612, %s29, 1
        %s614 = scalar_lea.vmem %s8, %s613
        %p615 = pneg %p233
        %p616 = pneg %p230
        %p617 = scmp.lt.s32.totalorder %s29, 1
        %s618 = scalar_select %p617, %s29, 1
        %s619 = scalar_lea.vmem %s9, %s618
        %p620 = pneg %p259
        %p621 = pneg %p256
        %p622 = scmp.lt.s32.totalorder %s29, 1
        %s623 = scalar_select %p622, %s29, 1
        %s624 = scalar_lea.vmem %s10, %s623
        %p625 = pneg %p285
        %p626 = pneg %p282
        %p627 = scmp.lt.s32.totalorder %s29, 1
        %s628 = scalar_select %p627, %s29, 1
        %s629 = smul.addr %s628, 4
        %s630 = smul.addr %s629, 8
        %s631 = scalar_lea.vmem %s11, %s630
        %p632 = pneg %p311
        %p633 = pneg %p308
        %p634 = scmp.lt.s32.totalorder %s29, 1
        %s635 = scalar_select %p634, %s29, 1
        %s636 = scalar_lea.vmem %s12, %s635
        %p637 = pneg %p337
        %p638 = pneg %p334
        %p639 = scmp.lt.s32.totalorder %s29, 1
        %s640 = scalar_select %p639, %s29, 1
        %s641 = smul.addr %s640, 16
        %s642 = smul.addr %s641, 8
        %s643 = scalar_lea.vmem %s13, %s642
        %p644 = pneg %p363
        %p645 = pneg %p360
        %p646 = scmp.lt.s32.totalorder %s29, 1
        %s647 = scalar_select %p646, %s29, 1
        %s648 = scalar_lea.vmem %s14, %s647
        %p649 = pneg %p389
        %p650 = pneg %p386
        %p651 = scmp.lt.s32.totalorder %s29, 1
        %s652 = scalar_select %p651, %s29, 1
        %s653 = scalar_lea.vmem %s15, %s652
        %p654 = pneg %p415
        %p655 = pneg %p412
        %p656 = scmp.lt.s32.totalorder %s29, 1
        %s657 = scalar_select %p656, %s29, 1
        %s658 = scalar_lea.vmem %s16, %s657
        %p659 = pneg %p441
        %p660 = pneg %p438
        %p661 = pneg %p462
        %p662 = pneg %p459
        %p663 = scmp.lt.s32.totalorder %s29, 1
        %s664 = scalar_select %p663, %s29, 1
        %s665 = smul.addr %s664, 4
        %s666 = smul.addr %s665, 8
        %s667 = scalar_lea.vmem %s5, %s666
        %p668 = scmp.lt.s32.totalorder %s29, 1
        %s669 = scalar_select %p668, %s29, 1
        %s670 = scalar_lea.vmem %s6, %s669
        %p671 = scmp.lt.s32.totalorder %s29, 1
        %s672 = scalar_select %p671, %s29, 1
        %s673 = smul.addr %s672, 4
        %s674 = smul.addr %s673, 8
        %s675 = scalar_lea.vmem %s7, %s674
        %p676 = scmp.lt.s32.totalorder %s29, 1
        %s677 = scalar_select %p676, %s29, 1
        %s678 = scalar_lea.vmem %s8, %s677
        %p679 = scmp.lt.s32.totalorder %s29, 1
        %s680 = scalar_select %p679, %s29, 1
        %s681 = scalar_lea.vmem %s9, %s680
        %p682 = scmp.lt.s32.totalorder %s29, 1
        %s683 = scalar_select %p682, %s29, 1
        %s684 = scalar_lea.vmem %s10, %s683
        %p685 = scmp.lt.s32.totalorder %s29, 1
        %s686 = scalar_select %p685, %s29, 1
        %s687 = smul.addr %s686, 4
        %s688 = smul.addr %s687, 8
        %s689 = scalar_lea.vmem %s11, %s688
        %p690 = scmp.lt.s32.totalorder %s29, 1
        %s691 = scalar_select %p690, %s29, 1
        %s692 = scalar_lea.vmem %s12, %s691
        %p693 = scmp.lt.s32.totalorder %s29, 1
        %s694 = scalar_select %p693, %s29, 1
        %s695 = smul.addr %s694, 16
        %s696 = smul.addr %s695, 8
        %s697 = scalar_lea.vmem %s13, %s696
        %p698 = scmp.lt.s32.totalorder %s29, 1
        %s699 = scalar_select %p698, %s29, 1
        %s700 = scalar_lea.vmem %s14, %s699
        %p701 = scmp.lt.s32.totalorder %s29, 1
        %s702 = scalar_select %p701, %s29, 1
        %s703 = scalar_lea.vmem %s15, %s702
        %p704 = scmp.lt.s32.totalorder %s29, 1
        %s705 = scalar_select %p704, %s29, 1
        %s706 = scalar_lea.vmem %s16, %s705
        %p707 = scmp.eq.s32.totalorder %s29, 0
        // Predicated region
        $region89: #{tpu_custom_call.1} parent=87 // pred_check
          %p708 = pneg %p707
        $region90: #{tpu_custom_call.1} parent=87 // pred_check_branch
          %710 = sbr.rel (%p708) target = $region92
        $region91: #{tpu_custom_call.1} parent=87 // pred_region
          %v711 = vld [vmem:[%s0] sm:$0xff]
          %v712 = vld [vmem:[%s0 + $0x8] sm:$0xff]
          %v713 = vld [vmem:[%s1] sm:$0xff]
          %v714 = vld [vmem:[%s1 + $0x8] sm:$0xff]
          %v715 = vadd.f32 %v711, %v713
          %v716 = vadd.f32 %v712, %v714
          %v717 = vld [vmem:[%s3] sm:$0x1]
          %v718 = vld [vmem:[%s4] sm:$0x1]
          %vm719 = vcmask 261120
          %v720 = vsel %vm719, %v715, 0.0
          %721 = vadd.xlane.f32.xlu0 %v720
          %v722 = vpop.xlane.xlu0 %721
          %v723 = vsel %vm719, %v716, 0.0
          %724 = vadd.xlane.f32.xlu0 %v723
          %v725 = vpop.xlane.xlu0 %724
          %v726 = vrcp.pop 32.0
          %v727 = vmul.f32 %v722, %v726
          %v728 = vmul.f32 %v725, %v726
          %v729 = vsub.f32 %v715, %v727
          %v730 = vsub.f32 %v716, %v728
          %v731 = vmul.f32 %v729, %v729
          %v732 = vmul.f32 %v730, %v730
          %v733 = vsel %vm719, %v731, 0.0
          %734 = vadd.xlane.f32.xlu0 %v733
          %v735 = vpop.xlane.xlu0 %734
          %v736 = vsel %vm719, %v732, 0.0
          %737 = vadd.xlane.f32.xlu0 %v736
          %v738 = vpop.xlane.xlu0 %737
          %v739 = vmul.f32 %v735, %v726
          %v740 = vmul.f32 %v738, %v726
          %v741 = vadd.f32 %v739, 1e-05
          %v742 = vadd.f32 %v740, 1e-05
          %v743 = vrsqrt.pop %v741
          %v744 = vrsqrt.pop %v742
          %v745 = vmul.f32 %v729, %v743
          %v746 = vmul.f32 %v730, %v744
          %v748 = vlaneseq
          %v749 = vshrl.u32 %v748, 7
          %v750 = vsub.s32 0, %v749
          %v751 = vrot.slane %v717, %v750
          %v753 = vmul.f32 %v745, %v751
          %v754 = vmul.f32 %v746, %v751
          %v756 = vlaneseq
          %v757 = vshrl.u32 %v756, 7
          %v758 = vsub.s32 0, %v757
          %v759 = vrot.slane %v718, %v758
          %v761 = vadd.f32 %v753, %v759
          %v762 = vadd.f32 %v754, %v759
          %763 = vst.msk [vmem:[#allocation2] sm:$0xff] %vm719, %v761
          %764 = vst.msk [vmem:[#allocation2 + $0x8] sm:$0xff] %vm719, %v762
        $region92: #{tpu_custom_call.1} parent=87 // pred_fallthru
          _
        %v765 = vld [vmem:[#allocation2] sm:$0xff]
        %v766 = vld [vmem:[#allocation2 + $0x8] sm:$0xff]
        %v767 = vld [vmem:[%s667] sm:$0xff]
        %v768 = vld [vmem:[%s667 + $0x8] sm:$0xff]
        %v769 = vld [vmem:[%s667 + $0x10] sm:$0xff]
        %v770 = vld [vmem:[%s667 + $0x18] sm:$0xff]
        %v771 = vld [vmem:[%s670] sm:$0x1]
        %v773 = vlaneseq
        %v774 = vshrl.u32 %v773, 7
        %v775 = vsub.s32 0, %v774
        %v776 = vrot.slane %v771, %v775
        %vm778 = vcmask 261120
        %v780 = vsel %vm778, %v765, 0
        %v783 = vsel %vm778, %v766, 0
        %785 = vmatprep.subr.mxu0 0.0
        %786 = vmatpush1.msra.mxu0 0.0
        %787 = vmatprep.subr.mxu0 0.0
        %788 = vmatpush1.msra.mxu0 0.0
        %789 = vmatprep.subr.mxu0 0.0
        %790 = vmatpush1.msra.mxu0 0.0
        %791 = vmatprep.subr.mxu0 0.0
        %792 = vmatpush1.msra.mxu0 0.0
        %793 = vmatprep.subr.mxu0 0.0
        %794 = vmatpush1.msra.mxu0 0.0
        %795 = vmatprep.subr.mxu0 0.0
        %796 = vmatpush1.msra.mxu0 0.0
        %797 = vmatprep.subr.mxu0 0.0
        %798 = vmatpush1.msra.mxu0 0.0
        %799 = vmatprep.subr.mxu0 0.0
        %800 = vmatpush1.msra.mxu0 0.0
        %801 = vmatprep.subr.mxu0 0.0
        %802 = vmatpush1.msra.mxu0 0.0
        %803 = vmatprep.subr.mxu0 0.0
        %804 = vmatpush1.msra.mxu0 0.0
        %805 = vmatprep.subr.mxu0 0.0
        %806 = vmatpush1.msra.mxu0 0.0
        %807 = vmatprep.subr.mxu0 0.0
        %808 = vmatpush1.msra.mxu0 0.0
        %809 = vmatprep.subr.mxu0 0.0
        %810 = vmatpush1.msra.mxu0 %v770
        %811 = vmatprep.subr.mxu0 0.0
        %812 = vmatpush1.msra.mxu0 %v769
        %813 = vmatprep.subr.mxu0 0.0
        %814 = vmatpush1.msra.mxu0 %v768
        %815 = vmatprep.subr.mxu0 0.0
        %816 = vmatpush1.msra.mxu0 %v767
        %817 = vmatprep.subr.mxu0 0.0
        %818 = vmatpush2.msra.mxu0 0.0
        %819 = vmatprep.subr.mxu0 0.0
        %820 = vmatpush2.msra.mxu0 0.0
        %821 = vmatprep.subr.mxu0 0.0
        %822 = vmatpush2.msra.mxu0 0.0
        %823 = vmatprep.subr.mxu0 0.0
        %824 = vmatpush2.msra.mxu0 0.0
        %825 = vmatprep.subr.mxu0 0.0
        %826 = vmatpush2.msra.mxu0 0.0
        %827 = vmatprep.subr.mxu0 0.0
        %828 = vmatpush2.msra.mxu0 0.0
        %829 = vmatprep.subr.mxu0 0.0
        %830 = vmatpush2.msra.mxu0 0.0
        %831 = vmatprep.subr.mxu0 0.0
        %832 = vmatpush2.msra.mxu0 0.0
        %833 = vmatprep.subr.mxu0 0.0
        %834 = vmatpush2.msra.mxu0 0.0
        %835 = vmatprep.subr.mxu0 0.0
        %836 = vmatpush2.msra.mxu0 0.0
        %837 = vmatprep.subr.mxu0 0.0
        %838 = vmatpush2.msra.mxu0 0.0
        %839 = vmatprep.subr.mxu0 0.0
        %840 = vmatpush2.msra.mxu0 0.0
        %841 = vmatprep.subr.mxu0 0.0
        %842 = vmatpush2.msra.mxu0 0.0
        %843 = vmatprep.subr.mxu0 0.0
        %844 = vmatpush2.msra.mxu0 0.0
        %845 = vmatprep.subr.mxu0 0.0
        %846 = vmatpush2.msra.mxu0 0.0
        %847 = vmatprep.subr.mxu0 0.0
        %848 = vmatpush2.msra.mxu0 0.0
        %849 = vmatprep.mubr.f32.mxu0 0.0
        %850 = vmatmul.mubr.f32.gmra.mxu0 %v780
        %v851 = vpop.f32.mrf.mxu0
        %v852 = vadd.f32 %v776, %v851
        %v853 = vpop.f32.mrf.mxu0
        %854 = vmatprep.mubr.f32.mxu0 0.0
        %855 = vmatmul.mubr.f32.gmra.mxu0 %v783
        %v856 = vpop.f32.mrf.mxu0
        %v857 = vadd.f32 %v776, %v856
        %v858 = vpop.f32.mrf.mxu0
        %859 = vdwg.mxu0
        %v860 = vld [vmem:[%s675] sm:$0xff]
        %v861 = vld [vmem:[%s675 + $0x8] sm:$0xff]
        %v862 = vld [vmem:[%s675 + $0x10] sm:$0xff]
        %v863 = vld [vmem:[%s675 + $0x18] sm:$0xff]
        %v864 = vmul.f32 %v852, 0.35355338
        %v865 = vmul.f32 %v857, 0.35355338
        %v866 = vld [vmem:[%s2] sm:$0xff]
        %v867 = vld [vmem:[%s2 + $0x8] sm:$0xff]
        %870 = vrot.lane.b32.xlu0 %v852, 96
        %v871 = vpop.permute.xlu0 %870
        %872 = vrot.lane.b32.xlu0 %v857, 96
        %v873 = vpop.permute.xlu0 %872
        %vm874 = vcmask 64512
        %v876 = vsel %vm874, %v864, 0
        %v879 = vsel %vm874, %v865, 0
        %v881 = vsel %vm874, %v871, 0
        %v883 = vsel %vm874, %v873, 0
        %885 = vmatprep.subr.mxu0 0.0
        %886 = vmatpush1.xpose.msra.mxu0 0.0
        %887 = vmatprep.subr.mxu0 0.0
        %888 = vmatpush1.xpose.msra.mxu0 0.0
        %889 = vmatprep.subr.mxu0 0.0
        %890 = vmatpush1.xpose.msra.mxu0 0.0
        %891 = vmatprep.subr.mxu0 0.0
        %892 = vmatpush1.xpose.msra.mxu0 0.0
        %893 = vmatprep.subr.mxu0 0.0
        %894 = vmatpush1.xpose.msra.mxu0 0.0
        %895 = vmatprep.subr.mxu0 0.0
        %896 = vmatpush1.xpose.msra.mxu0 0.0
        %897 = vmatprep.subr.mxu0 0.0
        %898 = vmatpush1.xpose.msra.mxu0 0.0
        %899 = vmatprep.subr.mxu0 0.0
        %900 = vmatpush1.xpose.msra.mxu0 0.0
        %901 = vmatprep.subr.mxu0 0.0
        %902 = vmatpush1.xpose.msra.mxu0 0.0
        %903 = vmatprep.subr.mxu0 0.0
        %904 = vmatpush1.xpose.msra.mxu0 0.0
        %905 = vmatprep.subr.mxu0 0.0
        %906 = vmatpush1.xpose.msra.mxu0 0.0
        %907 = vmatprep.subr.mxu0 0.0
        %908 = vmatpush1.xpose.msra.mxu0 0.0
        %909 = vmatprep.subr.mxu0 0.0
        %910 = vmatpush1.xpose.msra.mxu0 0.0
        %911 = vmatprep.subr.mxu0 0.0
        %912 = vmatpush1.xpose.msra.mxu0 0.0
        %913 = vmatprep.subr.mxu0 0.0
        %914 = vmatpush1.xpose.msra.mxu0 %v883
        %915 = vmatprep.subr.mxu0 0.0
        %916 = vmatpush1.xpose.msra.mxu0 %v881
        %917 = vmatprep.subr.mxu0 0.0
        %918 = vmatpush2.xpose.msra.mxu0 0.0
        %919 = vmatprep.subr.mxu0 0.0
        %920 = vmatpush2.xpose.msra.mxu0 0.0
        %921 = vmatprep.subr.mxu0 0.0
        %922 = vmatpush2.xpose.msra.mxu0 0.0
        %923 = vmatprep.subr.mxu0 0.0
        %924 = vmatpush2.xpose.msra.mxu0 0.0
        %925 = vmatprep.subr.mxu0 0.0
        %926 = vmatpush2.xpose.msra.mxu0 0.0
        %927 = vmatprep.subr.mxu0 0.0
        %928 = vmatpush2.xpose.msra.mxu0 0.0
        %929 = vmatprep.subr.mxu0 0.0
        %930 = vmatpush2.xpose.msra.mxu0 0.0
        %931 = vmatprep.subr.mxu0 0.0
        %932 = vmatpush2.xpose.msra.mxu0 0.0
        %933 = vmatprep.subr.mxu0 0.0
        %934 = vmatpush2.xpose.msra.mxu0 0.0
        %935 = vmatprep.subr.mxu0 0.0
        %936 = vmatpush2.xpose.msra.mxu0 0.0
        %937 = vmatprep.subr.mxu0 0.0
        %938 = vmatpush2.xpose.msra.mxu0 0.0
        %939 = vmatprep.subr.mxu0 0.0
        %940 = vmatpush2.xpose.msra.mxu0 0.0
        %941 = vmatprep.subr.mxu0 0.0
        %942 = vmatpush2.xpose.msra.mxu0 0.0
        %943 = vmatprep.subr.mxu0 0.0
        %944 = vmatpush2.xpose.msra.mxu0 0.0
        %945 = vmatprep.subr.mxu0 0.0
        %946 = vmatpush2.xpose.msra.mxu0 0.0
        %947 = vmatprep.subr.mxu0 0.0
        %948 = vmatpush2.xpose.msra.mxu0 0.0
        %949 = vmatprep.mubr.f32.mxu0 0.0
        %950 = vmatmul.mubr.f32.gmra.mxu0 %v876
        %v951 = vpop.f32.mrf.mxu0
        %v952 = vadd.f32 %v866, %v951
        %v953 = vpop.f32.mrf.mxu0
        %954 = vmatprep.mubr.f32.mxu0 0.0
        %955 = vmatmul.mubr.f32.gmra.mxu0 %v879
        %v956 = vpop.f32.mrf.mxu0
        %v957 = vadd.f32 %v867, %v956
        %v958 = vpop.f32.mrf.mxu0
        %959 = vdwg.mxu0
        %vm960 = vcmask 130048
        %v961 = vsel %vm960, %v952, -inf
        %962 = vmax.xlane.f32.xlu0 %v961
        %v963 = vpop.xlane.xlu0 %962
        %v964 = vsel %vm960, %v957, -inf
        %965 = vmax.xlane.f32.xlu0 %v964
        %v966 = vpop.xlane.xlu0 %965
        %v967 = vsub.f32 %v952, %v963
        %v968 = vsub.f32 %v957, %v966
        %v969 = vmul.f32 %v967, 1.442695
        %v970 = vpow.pop %v969
        %v971 = vmul.f32 %v968, 1.442695
        %v972 = vpow.pop %v971
        %v973 = vsel %vm960, %v970, 0.0
        %974 = vadd.xlane.f32.xlu0 %v973
        %v975 = vpop.xlane.xlu0 %974
        %v976 = vsel %vm960, %v972, 0.0
        %977 = vadd.xlane.f32.xlu0 %v976
        %v978 = vpop.xlane.xlu0 %977
        %v979 = vrcp.pop %v975
        %v980 = vrcp.pop %v978
        %v981 = vmul.f32 %v970, %v979
        %v982 = vmul.f32 %v972, %v980
        %983 = vrot.lane.b32.xlu0 %v852, 64
        %v984 = vpop.permute.xlu0 %983
        %985 = vrot.lane.b32.xlu0 %v857, 64
        %v986 = vpop.permute.xlu0 %985
        %v990 = vsel %vm960, %v981, 0
        %v993 = vsel %vm960, %v982, 0
        %995 = vmatprep.subr.mxu0 0.0
        %996 = vmatpush1.msra.mxu0 0.0
        %997 = vmatprep.subr.mxu0 0.0
        %998 = vmatpush1.msra.mxu0 0.0
        %999 = vmatprep.subr.mxu0 0.0
        %1000 = vmatpush1.msra.mxu0 0.0
        %1001 = vmatprep.subr.mxu0 0.0
        %1002 = vmatpush1.msra.mxu0 0.0
        %1003 = vmatprep.subr.mxu0 0.0
        %1004 = vmatpush1.msra.mxu0 0.0
        %1005 = vmatprep.subr.mxu0 0.0
        %1006 = vmatpush1.msra.mxu0 0.0
        %1007 = vmatprep.subr.mxu0 0.0
        %1008 = vmatpush1.msra.mxu0 0.0
        %1009 = vmatprep.subr.mxu0 0.0
        %1010 = vmatpush1.msra.mxu0 0.0
        %1011 = vmatprep.subr.mxu0 0.0
        %1012 = vmatpush1.msra.mxu0 0.0
        %1013 = vmatprep.subr.mxu0 0.0
        %1014 = vmatpush1.msra.mxu0 0.0
        %1015 = vmatprep.subr.mxu0 0.0
        %1016 = vmatpush1.msra.mxu0 0.0
        %1017 = vmatprep.subr.mxu0 0.0
        %1018 = vmatpush1.msra.mxu0 0.0
        %1019 = vmatprep.subr.mxu0 0.0
        %1020 = vmatpush1.msra.mxu0 0.0
        %1021 = vmatprep.subr.mxu0 0.0
        %1022 = vmatpush1.msra.mxu0 0.0
        %1023 = vmatprep.subr.mxu0 0.0
        %1024 = vmatpush1.msra.mxu0 %v986
        %1025 = vmatprep.subr.mxu0 0.0
        %1026 = vmatpush1.msra.mxu0 %v984
        %1027 = vmatprep.subr.mxu0 0.0
        %1028 = vmatpush2.msra.mxu0 0.0
        %1029 = vmatprep.subr.mxu0 0.0
        %1030 = vmatpush2.msra.mxu0 0.0
        %1031 = vmatprep.subr.mxu0 0.0
        %1032 = vmatpush2.msra.mxu0 0.0
        %1033 = vmatprep.subr.mxu0 0.0
        %1034 = vmatpush2.msra.mxu0 0.0
        %1035 = vmatprep.subr.mxu0 0.0
        %1036 = vmatpush2.msra.mxu0 0.0
        %1037 = vmatprep.subr.mxu0 0.0
        %1038 = vmatpush2.msra.mxu0 0.0
        %1039 = vmatprep.subr.mxu0 0.0
        %1040 = vmatpush2.msra.mxu0 0.0
        %1041 = vmatprep.subr.mxu0 0.0
        %1042 = vmatpush2.msra.mxu0 0.0
        %1043 = vmatprep.subr.mxu0 0.0
        %1044 = vmatpush2.msra.mxu0 0.0
        %1045 = vmatprep.subr.mxu0 0.0
        %1046 = vmatpush2.msra.mxu0 0.0
        %1047 = vmatprep.subr.mxu0 0.0
        %1048 = vmatpush2.msra.mxu0 0.0
        %1049 = vmatprep.subr.mxu0 0.0
        %1050 = vmatpush2.msra.mxu0 0.0
        %1051 = vmatprep.subr.mxu0 0.0
        %1052 = vmatpush2.msra.mxu0 0.0
        %1053 = vmatprep.subr.mxu0 0.0
        %1054 = vmatpush2.msra.mxu0 0.0
        %1055 = vmatprep.subr.mxu0 0.0
        %1056 = vmatpush2.msra.mxu0 0.0
        %1057 = vmatprep.subr.mxu0 0.0
        %1058 = vmatpush2.msra.mxu0 0.0
        %1059 = vmatprep.mubr.f32.mxu0 0.0
        %1060 = vmatmul.mubr.f32.gmra.mxu0 %v990
        %v1061 = vpop.f32.mrf.mxu0
        %v1062 = vadd.f32 0.0, %v1061
        %v1063 = vpop.f32.mrf.mxu0
        %1064 = vmatprep.mubr.f32.mxu0 0.0
        %1065 = vmatmul.mubr.f32.gmra.mxu0 %v993
        %v1066 = vpop.f32.mrf.mxu0
        %v1067 = vadd.f32 0.0, %v1066
        %v1068 = vpop.f32.mrf.mxu0
        %1069 = vdwg.mxu0
        %1070 = vrot.lane.b32.xlu0 %v864, 120
        %v1071 = vpop.permute.xlu0 %1070
        %1072 = vrot.lane.b32.xlu0 %v865, 120
        %v1073 = vpop.permute.xlu0 %1072
        %1074 = vrot.lane.b32.xlu0 %v852, 88
        %v1075 = vpop.permute.xlu0 %1074
        %1076 = vrot.lane.b32.xlu0 %v857, 88
        %v1077 = vpop.permute.xlu0 %1076
        %v1078 = vsel %vm874, %v1071, 0
        %v1080 = vsel %vm874, %v1073, 0
        %v1082 = vsel %vm874, %v1075, 0
        %v1084 = vsel %vm874, %v1077, 0
        %1086 = vmatprep.subr.mxu0 0.0
        %1087 = vmatpush1.xpose.msra.mxu0 0.0
        %1088 = vmatprep.subr.mxu0 0.0
        %1089 = vmatpush1.xpose.msra.mxu0 0.0
        %1090 = vmatprep.subr.mxu0 0.0
        %1091 = vmatpush1.xpose.msra.mxu0 0.0
        %1092 = vmatprep.subr.mxu0 0.0
        %1093 = vmatpush1.xpose.msra.mxu0 0.0
        %1094 = vmatprep.subr.mxu0 0.0
        %1095 = vmatpush1.xpose.msra.mxu0 0.0
        %1096 = vmatprep.subr.mxu0 0.0
        %1097 = vmatpush1.xpose.msra.mxu0 0.0
        %1098 = vmatprep.subr.mxu0 0.0
        %1099 = vmatpush1.xpose.msra.mxu0 0.0
        %1100 = vmatprep.subr.mxu0 0.0
        %1101 = vmatpush1.xpose.msra.mxu0 0.0
        %1102 = vmatprep.subr.mxu0 0.0
        %1103 = vmatpush1.xpose.msra.mxu0 0.0
        %1104 = vmatprep.subr.mxu0 0.0
        %1105 = vmatpush1.xpose.msra.mxu0 0.0
        %1106 = vmatprep.subr.mxu0 0.0
        %1107 = vmatpush1.xpose.msra.mxu0 0.0
        %1108 = vmatprep.subr.mxu0 0.0
        %1109 = vmatpush1.xpose.msra.mxu0 0.0
        %1110 = vmatprep.subr.mxu0 0.0
        %1111 = vmatpush1.xpose.msra.mxu0 0.0
        %1112 = vmatprep.subr.mxu0 0.0
        %1113 = vmatpush1.xpose.msra.mxu0 0.0
        %1114 = vmatprep.subr.mxu0 0.0
        %1115 = vmatpush1.xpose.msra.mxu0 %v1084
        %1116 = vmatprep.subr.mxu0 0.0
        %1117 = vmatpush1.xpose.msra.mxu0 %v1082
        %1118 = vmatprep.subr.mxu0 0.0
        %1119 = vmatpush2.xpose.msra.mxu0 0.0
        %1120 = vmatprep.subr.mxu0 0.0
        %1121 = vmatpush2.xpose.msra.mxu0 0.0
        %1122 = vmatprep.subr.mxu0 0.0
        %1123 = vmatpush2.xpose.msra.mxu0 0.0
        %1124 = vmatprep.subr.mxu0 0.0
        %1125 = vmatpush2.xpose.msra.mxu0 0.0
        %1126 = vmatprep.subr.mxu0 0.0
        %1127 = vmatpush2.xpose.msra.mxu0 0.0
        %1128 = vmatprep.subr.mxu0 0.0
        %1129 = vmatpush2.xpose.msra.mxu0 0.0
        %1130 = vmatprep.subr.mxu0 0.0
        %1131 = vmatpush2.xpose.msra.mxu0 0.0
        %1132 = vmatprep.subr.mxu0 0.0
        %1133 = vmatpush2.xpose.msra.mxu0 0.0
        %1134 = vmatprep.subr.mxu0 0.0
        %1135 = vmatpush2.xpose.msra.mxu0 0.0
        %1136 = vmatprep.subr.mxu0 0.0
        %1137 = vmatpush2.xpose.msra.mxu0 0.0
        %1138 = vmatprep.subr.mxu0 0.0
        %1139 = vmatpush2.xpose.msra.mxu0 0.0
        %1140 = vmatprep.subr.mxu0 0.0
        %1141 = vmatpush2.xpose.msra.mxu0 0.0
        %1142 = vmatprep.subr.mxu0 0.0
        %1143 = vmatpush2.xpose.msra.mxu0 0.0
        %1144 = vmatprep.subr.mxu0 0.0
        %1145 = vmatpush2.xpose.msra.mxu0 0.0
        %1146 = vmatprep.subr.mxu0 0.0
        %1147 = vmatpush2.xpose.msra.mxu0 0.0
        %1148 = vmatprep.subr.mxu0 0.0
        %1149 = vmatpush2.xpose.msra.mxu0 0.0
        %1150 = vmatprep.mubr.f32.mxu0 0.0
        %1151 = vmatmul.mubr.f32.gmra.mxu0 %v1078
        %v1152 = vpop.f32.mrf.mxu0
        %v1153 = vadd.f32 %v866, %v1152
        %v1154 = vpop.f32.mrf.mxu0
        %1155 = vmatprep.mubr.f32.mxu0 0.0
        %1156 = vmatmul.mubr.f32.gmra.mxu0 %v1080
        %v1157 = vpop.f32.mrf.mxu0
        %v1158 = vadd.f32 %v867, %v1157
        %v1159 = vpop.f32.mrf.mxu0
        %1160 = vdwg.mxu0
        %v1161 = vsel %vm960, %v1153, -inf
        %1162 = vmax.xlane.f32.xlu0 %v1161
        %v1163 = vpop.xlane.xlu0 %1162
        %v1164 = vsel %vm960, %v1158, -inf
        %1165 = vmax.xlane.f32.xlu0 %v1164
        %v1166 = vpop.xlane.xlu0 %1165
        %v1167 = vsub.f32 %v1153, %v1163
        %v1168 = vsub.f32 %v1158, %v1166
        %v1169 = vmul.f32 %v1167, 1.442695
        %v1170 = vpow.pop %v1169
        %v1171 = vmul.f32 %v1168, 1.442695
        %v1172 = vpow.pop %v1171
        %v1173 = vsel %vm960, %v1170, 0.0
        %1174 = vadd.xlane.f32.xlu0 %v1173
        %v1175 = vpop.xlane.xlu0 %1174
        %v1176 = vsel %vm960, %v1172, 0.0
        %1177 = vadd.xlane.f32.xlu0 %v1176
        %v1178 = vpop.xlane.xlu0 %1177
        %v1179 = vrcp.pop %v1175
        %v1180 = vrcp.pop %v1178
        %v1181 = vmul.f32 %v1170, %v1179
        %v1182 = vmul.f32 %v1172, %v1180
        %1183 = vrot.lane.b32.xlu0 %v852, 56
        %v1184 = vpop.permute.xlu0 %1183
        %1185 = vrot.lane.b32.xlu0 %v857, 56
        %v1186 = vpop.permute.xlu0 %1185
        %v1190 = vsel %vm960, %v1181, 0
        %v1193 = vsel %vm960, %v1182, 0
        %1195 = vmatprep.subr.mxu0 0.0
        %1196 = vmatpush1.msra.mxu0 0.0
        %1197 = vmatprep.subr.mxu0 0.0
        %1198 = vmatpush1.msra.mxu0 0.0
        %1199 = vmatprep.subr.mxu0 0.0
        %1200 = vmatpush1.msra.mxu0 0.0
        %1201 = vmatprep.subr.mxu0 0.0
        %1202 = vmatpush1.msra.mxu0 0.0
        %1203 = vmatprep.subr.mxu0 0.0
        %1204 = vmatpush1.msra.mxu0 0.0
        %1205 = vmatprep.subr.mxu0 0.0
        %1206 = vmatpush1.msra.mxu0 0.0
        %1207 = vmatprep.subr.mxu0 0.0
        %1208 = vmatpush1.msra.mxu0 0.0
        %1209 = vmatprep.subr.mxu0 0.0
        %1210 = vmatpush1.msra.mxu0 0.0
        %1211 = vmatprep.subr.mxu0 0.0
        %1212 = vmatpush1.msra.mxu0 0.0
        %1213 = vmatprep.subr.mxu0 0.0
        %1214 = vmatpush1.msra.mxu0 0.0
        %1215 = vmatprep.subr.mxu0 0.0
        %1216 = vmatpush1.msra.mxu0 0.0
        %1217 = vmatprep.subr.mxu0 0.0
        %1218 = vmatpush1.msra.mxu0 0.0
        %1219 = vmatprep.subr.mxu0 0.0
        %1220 = vmatpush1.msra.mxu0 0.0
        %1221 = vmatprep.subr.mxu0 0.0
        %1222 = vmatpush1.msra.mxu0 0.0
        %1223 = vmatprep.subr.mxu0 0.0
        %1224 = vmatpush1.msra.mxu0 %v1186
        %1225 = vmatprep.subr.mxu0 0.0
        %1226 = vmatpush1.msra.mxu0 %v1184
        %1227 = vmatprep.subr.mxu0 0.0
        %1228 = vmatpush2.msra.mxu0 0.0
        %1229 = vmatprep.subr.mxu0 0.0
        %1230 = vmatpush2.msra.mxu0 0.0
        %1231 = vmatprep.subr.mxu0 0.0
        %1232 = vmatpush2.msra.mxu0 0.0
        %1233 = vmatprep.subr.mxu0 0.0
        %1234 = vmatpush2.msra.mxu0 0.0
        %1235 = vmatprep.subr.mxu0 0.0
        %1236 = vmatpush2.msra.mxu0 0.0
        %1237 = vmatprep.subr.mxu0 0.0
        %1238 = vmatpush2.msra.mxu0 0.0
        %1239 = vmatprep.subr.mxu0 0.0
        %1240 = vmatpush2.msra.mxu0 0.0
        %1241 = vmatprep.subr.mxu0 0.0
        %1242 = vmatpush2.msra.mxu0 0.0
        %1243 = vmatprep.subr.mxu0 0.0
        %1244 = vmatpush2.msra.mxu0 0.0
        %1245 = vmatprep.subr.mxu0 0.0
        %1246 = vmatpush2.msra.mxu0 0.0
        %1247 = vmatprep.subr.mxu0 0.0
        %1248 = vmatpush2.msra.mxu0 0.0
        %1249 = vmatprep.subr.mxu0 0.0
        %1250 = vmatpush2.msra.mxu0 0.0
        %1251 = vmatprep.subr.mxu0 0.0
        %1252 = vmatpush2.msra.mxu0 0.0
        %1253 = vmatprep.subr.mxu0 0.0
        %1254 = vmatpush2.msra.mxu0 0.0
        %1255 = vmatprep.subr.mxu0 0.0
        %1256 = vmatpush2.msra.mxu0 0.0
        %1257 = vmatprep.subr.mxu0 0.0
        %1258 = vmatpush2.msra.mxu0 0.0
        %1259 = vmatprep.mubr.f32.mxu0 0.0
        %1260 = vmatmul.mubr.f32.gmra.mxu0 %v1190
        %v1261 = vpop.f32.mrf.mxu0
        %v1262 = vadd.f32 0.0, %v1261
        %v1263 = vpop.f32.mrf.mxu0
        %1264 = vmatprep.mubr.f32.mxu0 0.0
        %1265 = vmatmul.mubr.f32.gmra.mxu0 %v1193
        %v1266 = vpop.f32.mrf.mxu0
        %v1267 = vadd.f32 0.0, %v1266
        %v1268 = vpop.f32.mrf.mxu0
        %1269 = vdwg.mxu0
        %v1271 = vsel %vm874, %v1262, 0
        %v1274 = vsel %vm874, %v1267, 0
        %1276 = vmatprep.subr.mxu0 0.0
        %1277 = vmatpush1.msra.mxu0 0.0
        %1278 = vmatprep.subr.mxu0 0.0
        %1279 = vmatpush1.msra.mxu0 0.0
        %1280 = vmatprep.subr.mxu0 0.0
        %1281 = vmatpush1.msra.mxu0 0.0
        %1282 = vmatprep.subr.mxu0 0.0
        %1283 = vmatpush1.msra.mxu0 0.0
        %1284 = vmatprep.subr.mxu0 0.0
        %1285 = vmatpush1.msra.mxu0 0.0
        %1286 = vmatprep.subr.mxu0 0.0
        %1287 = vmatpush1.msra.mxu0 0.0
        %1288 = vmatprep.subr.mxu0 0.0
        %1289 = vmatpush1.msra.mxu0 0.0
        %1290 = vmatprep.subr.mxu0 0.0
        %1291 = vmatpush1.msra.mxu0 0.0
        %1292 = vmatprep.subr.mxu0 0.0
        %1293 = vmatpush1.msra.mxu0 0.0
        %1294 = vmatprep.subr.mxu0 0.0
        %1295 = vmatpush1.msra.mxu0 0.0
        %1296 = vmatprep.subr.mxu0 0.0
        %1297 = vmatpush1.msra.mxu0 0.0
        %1298 = vmatprep.subr.mxu0 0.0
        %1299 = vmatpush1.msra.mxu0 0.0
        %1300 = vmatprep.subr.mxu0 0.0
        %1301 = vmatpush1.msra.mxu0 0.0
        %1302 = vmatprep.subr.mxu0 0.0
        %1303 = vmatpush1.msra.mxu0 0.0
        %1304 = vmatprep.subr.mxu0 0.0
        %1305 = vmatpush1.msra.mxu0 0.0
        %1306 = vmatprep.subr.mxu0 0.0
        %1307 = vmatpush1.msra.mxu0 %v861
        %1308 = vmatprep.subr.mxu0 0.0
        %1309 = vmatpush2.msra.mxu0 0.0
        %1310 = vmatprep.subr.mxu0 0.0
        %1311 = vmatpush2.msra.mxu0 0.0
        %1312 = vmatprep.subr.mxu0 0.0
        %1313 = vmatpush2.msra.mxu0 0.0
        %1314 = vmatprep.subr.mxu0 0.0
        %1315 = vmatpush2.msra.mxu0 0.0
        %1316 = vmatprep.subr.mxu0 0.0
        %1317 = vmatpush2.msra.mxu0 0.0
        %1318 = vmatprep.subr.mxu0 0.0
        %1319 = vmatpush2.msra.mxu0 0.0
        %1320 = vmatprep.subr.mxu0 0.0
        %1321 = vmatpush2.msra.mxu0 0.0
        %1322 = vmatprep.subr.mxu0 0.0
        %1323 = vmatpush2.msra.mxu0 0.0
        %1324 = vmatprep.subr.mxu0 0.0
        %1325 = vmatpush2.msra.mxu0 0.0
        %1326 = vmatprep.subr.mxu0 0.0
        %1327 = vmatpush2.msra.mxu0 0.0
        %1328 = vmatprep.subr.mxu0 0.0
        %1329 = vmatpush2.msra.mxu0 0.0
        %1330 = vmatprep.subr.mxu0 0.0
        %1331 = vmatpush2.msra.mxu0 0.0
        %1332 = vmatprep.subr.mxu0 0.0
        %1333 = vmatpush2.msra.mxu0 0.0
        %1334 = vmatprep.subr.mxu0 0.0
        %1335 = vmatpush2.msra.mxu0 0.0
        %1336 = vmatprep.subr.mxu0 0.0
        %1337 = vmatpush2.msra.mxu0 0.0
        %1338 = vmatprep.subr.mxu0 0.0
        %1339 = vmatpush2.msra.mxu0 0.0
        %1340 = vmatprep.mubr.f32.mxu0 0.0
        %1341 = vmatmul.mubr.f32.gmra.mxu0 %v1271
        %v1342 = vpop.f32.mrf.mxu0
        %v1343 = vadd.f32 0.0, %v1342
        %v1344 = vpop.f32.mrf.mxu0
        %1345 = vmatprep.mubr.f32.mxu0 0.0
        %1346 = vmatmul.mubr.f32.gmra.mxu0 %v1274
        %v1347 = vpop.f32.mrf.mxu0
        %v1348 = vadd.f32 0.0, %v1347
        %v1349 = vpop.f32.mrf.mxu0
        %1350 = vdwg.mxu0
        %v1352 = vsel %vm874, %v1062, 0
        %v1355 = vsel %vm874, %v1067, 0
        %1357 = vmatprep.subr.mxu0 0.0
        %1358 = vmatpush1.msra.mxu0 0.0
        %1359 = vmatprep.subr.mxu0 0.0
        %1360 = vmatpush1.msra.mxu0 0.0
        %1361 = vmatprep.subr.mxu0 0.0
        %1362 = vmatpush1.msra.mxu0 0.0
        %1363 = vmatprep.subr.mxu0 0.0
        %1364 = vmatpush1.msra.mxu0 0.0
        %1365 = vmatprep.subr.mxu0 0.0
        %1366 = vmatpush1.msra.mxu0 0.0
        %1367 = vmatprep.subr.mxu0 0.0
        %1368 = vmatpush1.msra.mxu0 0.0
        %1369 = vmatprep.subr.mxu0 0.0
        %1370 = vmatpush1.msra.mxu0 0.0
        %1371 = vmatprep.subr.mxu0 0.0
        %1372 = vmatpush1.msra.mxu0 0.0
        %1373 = vmatprep.subr.mxu0 0.0
        %1374 = vmatpush1.msra.mxu0 0.0
        %1375 = vmatprep.subr.mxu0 0.0
        %1376 = vmatpush1.msra.mxu0 0.0
        %1377 = vmatprep.subr.mxu0 0.0
        %1378 = vmatpush1.msra.mxu0 0.0
        %1379 = vmatprep.subr.mxu0 0.0
        %1380 = vmatpush1.msra.mxu0 0.0
        %1381 = vmatprep.subr.mxu0 0.0
        %1382 = vmatpush1.msra.mxu0 0.0
        %1383 = vmatprep.subr.mxu0 0.0
        %1384 = vmatpush1.msra.mxu0 0.0
        %1385 = vmatprep.subr.mxu0 0.0
        %1386 = vmatpush1.msra.mxu0 0.0
        %1387 = vmatprep.subr.mxu0 0.0
        %1388 = vmatpush1.msra.mxu0 %v860
        %1389 = vmatprep.subr.mxu0 0.0
        %1390 = vmatpush2.msra.mxu0 0.0
        %1391 = vmatprep.subr.mxu0 0.0
        %1392 = vmatpush2.msra.mxu0 0.0
        %1393 = vmatprep.subr.mxu0 0.0
        %1394 = vmatpush2.msra.mxu0 0.0
        %1395 = vmatprep.subr.mxu0 0.0
        %1396 = vmatpush2.msra.mxu0 0.0
        %1397 = vmatprep.subr.mxu0 0.0
        %1398 = vmatpush2.msra.mxu0 0.0
        %1399 = vmatprep.subr.mxu0 0.0
        %1400 = vmatpush2.msra.mxu0 0.0
        %1401 = vmatprep.subr.mxu0 0.0
        %1402 = vmatpush2.msra.mxu0 0.0
        %1403 = vmatprep.subr.mxu0 0.0
        %1404 = vmatpush2.msra.mxu0 0.0
        %1405 = vmatprep.subr.mxu0 0.0
        %1406 = vmatpush2.msra.mxu0 0.0
        %1407 = vmatprep.subr.mxu0 0.0
        %1408 = vmatpush2.msra.mxu0 0.0
        %1409 = vmatprep.subr.mxu0 0.0
        %1410 = vmatpush2.msra.mxu0 0.0
        %1411 = vmatprep.subr.mxu0 0.0
        %1412 = vmatpush2.msra.mxu0 0.0
        %1413 = vmatprep.subr.mxu0 0.0
        %1414 = vmatpush2.msra.mxu0 0.0
        %1415 = vmatprep.subr.mxu0 0.0
        %1416 = vmatpush2.msra.mxu0 0.0
        %1417 = vmatprep.subr.mxu0 0.0
        %1418 = vmatpush2.msra.mxu0 0.0
        %1419 = vmatprep.subr.mxu0 0.0
        %1420 = vmatpush2.msra.mxu0 0.0
        %1421 = vmatprep.mubr.f32.mxu0 0.0
        %1422 = vmatmul.mubr.f32.gmra.mxu0 %v1352
        %v1423 = vpop.f32.mrf.mxu0
        %v1424 = vadd.f32 %v1343, %v1423
        %v1425 = vpop.f32.mrf.mxu0
        %1426 = vmatprep.mubr.f32.mxu0 0.0
        %1427 = vmatmul.mubr.f32.gmra.mxu0 %v1355
        %v1428 = vpop.f32.mrf.mxu0
        %v1429 = vadd.f32 %v1348, %v1428
        %v1430 = vpop.f32.mrf.mxu0
        %1431 = vdwg.mxu0
        %1432 = vrot.lane.b32.xlu0 %v864, 112
        %v1433 = vpop.permute.xlu0 %1432
        %1434 = vrot.lane.b32.xlu0 %v865, 112
        %v1435 = vpop.permute.xlu0 %1434
        %1436 = vrot.lane.b32.xlu0 %v852, 80
        %v1437 = vpop.permute.xlu0 %1436
        %1438 = vrot.lane.b32.xlu0 %v857, 80
        %v1439 = vpop.permute.xlu0 %1438
        %v1440 = vsel %vm874, %v1433, 0
        %v1442 = vsel %vm874, %v1435, 0
        %v1444 = vsel %vm874, %v1437, 0
        %v1446 = vsel %vm874, %v1439, 0
        %1448 = vmatprep.subr.mxu0 0.0
        %1449 = vmatpush1.xpose.msra.mxu0 0.0
        %1450 = vmatprep.subr.mxu0 0.0
        %1451 = vmatpush1.xpose.msra.mxu0 0.0
        %1452 = vmatprep.subr.mxu0 0.0
        %1453 = vmatpush1.xpose.msra.mxu0 0.0
        %1454 = vmatprep.subr.mxu0 0.0
        %1455 = vmatpush1.xpose.msra.mxu0 0.0
        %1456 = vmatprep.subr.mxu0 0.0
        %1457 = vmatpush1.xpose.msra.mxu0 0.0
        %1458 = vmatprep.subr.mxu0 0.0
        %1459 = vmatpush1.xpose.msra.mxu0 0.0
        %1460 = vmatprep.subr.mxu0 0.0
        %1461 = vmatpush1.xpose.msra.mxu0 0.0
        %1462 = vmatprep.subr.mxu0 0.0
        %1463 = vmatpush1.xpose.msra.mxu0 0.0
        %1464 = vmatprep.subr.mxu0 0.0
        %1465 = vmatpush1.xpose.msra.mxu0 0.0
        %1466 = vmatprep.subr.mxu0 0.0
        %1467 = vmatpush1.xpose.msra.mxu0 0.0
        %1468 = vmatprep.subr.mxu0 0.0
        %1469 = vmatpush1.xpose.msra.mxu0 0.0
        %1470 = vmatprep.subr.mxu0 0.0
        %1471 = vmatpush1.xpose.msra.mxu0 0.0
        %1472 = vmatprep.subr.mxu0 0.0
        %1473 = vmatpush1.xpose.msra.mxu0 0.0
        %1474 = vmatprep.subr.mxu0 0.0
        %1475 = vmatpush1.xpose.msra.mxu0 0.0
        %1476 = vmatprep.subr.mxu0 0.0
        %1477 = vmatpush1.xpose.msra.mxu0 %v1446
        %1478 = vmatprep.subr.mxu0 0.0
        %1479 = vmatpush1.xpose.msra.mxu0 %v1444
        %1480 = vmatprep.subr.mxu0 0.0
        %1481 = vmatpush2.xpose.msra.mxu0 0.0
        %1482 = vmatprep.subr.mxu0 0.0
        %1483 = vmatpush2.xpose.msra.mxu0 0.0
        %1484 = vmatprep.subr.mxu0 0.0
        %1485 = vmatpush2.xpose.msra.mxu0 0.0
        %1486 = vmatprep.subr.mxu0 0.0
        %1487 = vmatpush2.xpose.msra.mxu0 0.0
        %1488 = vmatprep.subr.mxu0 0.0
        %1489 = vmatpush2.xpose.msra.mxu0 0.0
        %1490 = vmatprep.subr.mxu0 0.0
        %1491 = vmatpush2.xpose.msra.mxu0 0.0
        %1492 = vmatprep.subr.mxu0 0.0
        %1493 = vmatpush2.xpose.msra.mxu0 0.0
        %1494 = vmatprep.subr.mxu0 0.0
        %1495 = vmatpush2.xpose.msra.mxu0 0.0
        %1496 = vmatprep.subr.mxu0 0.0
        %1497 = vmatpush2.xpose.msra.mxu0 0.0
        %1498 = vmatprep.subr.mxu0 0.0
        %1499 = vmatpush2.xpose.msra.mxu0 0.0
        %1500 = vmatprep.subr.mxu0 0.0
        %1501 = vmatpush2.xpose.msra.mxu0 0.0
        %1502 = vmatprep.subr.mxu0 0.0
        %1503 = vmatpush2.xpose.msra.mxu0 0.0
        %1504 = vmatprep.subr.mxu0 0.0
        %1505 = vmatpush2.xpose.msra.mxu0 0.0
        %1506 = vmatprep.subr.mxu0 0.0
        %1507 = vmatpush2.xpose.msra.mxu0 0.0
        %1508 = vmatprep.subr.mxu0 0.0
        %1509 = vmatpush2.xpose.msra.mxu0 0.0
        %1510 = vmatprep.subr.mxu0 0.0
        %1511 = vmatpush2.xpose.msra.mxu0 0.0
        %1512 = vmatprep.mubr.f32.mxu0 0.0
        %1513 = vmatmul.mubr.f32.gmra.mxu0 %v1440
        %v1514 = vpop.f32.mrf.mxu0
        %v1515 = vadd.f32 %v866, %v1514
        %v1516 = vpop.f32.mrf.mxu0
        %1517 = vmatprep.mubr.f32.mxu0 0.0
        %1518 = vmatmul.mubr.f32.gmra.mxu0 %v1442
        %v1519 = vpop.f32.mrf.mxu0
        %v1520 = vadd.f32 %v867, %v1519
        %v1521 = vpop.f32.mrf.mxu0
        %1522 = vdwg.mxu0
        %v1523 = vsel %vm960, %v1515, -inf
        %1524 = vmax.xlane.f32.xlu0 %v1523
        %v1525 = vpop.xlane.xlu0 %1524
        %v1526 = vsel %vm960, %v1520, -inf
        %1527 = vmax.xlane.f32.xlu0 %v1526
        %v1528 = vpop.xlane.xlu0 %1527
        %v1529 = vsub.f32 %v1515, %v1525
        %v1530 = vsub.f32 %v1520, %v1528
        %v1531 = vmul.f32 %v1529, 1.442695
        %v1532 = vpow.pop %v1531
        %v1533 = vmul.f32 %v1530, 1.442695
        %v1534 = vpow.pop %v1533
        %v1535 = vsel %vm960, %v1532, 0.0
        %1536 = vadd.xlane.f32.xlu0 %v1535
        %v1537 = vpop.xlane.xlu0 %1536
        %v1538 = vsel %vm960, %v1534, 0.0
        %1539 = vadd.xlane.f32.xlu0 %v1538
        %v1540 = vpop.xlane.xlu0 %1539
        %v1541 = vrcp.pop %v1537
        %v1542 = vrcp.pop %v1540
        %v1543 = vmul.f32 %v1532, %v1541
        %v1544 = vmul.f32 %v1534, %v1542
        %1545 = vrot.lane.b32.xlu0 %v852, 48
        %v1546 = vpop.permute.xlu0 %1545
        %1547 = vrot.lane.b32.xlu0 %v857, 48
        %v1548 = vpop.permute.xlu0 %1547
        %v1552 = vsel %vm960, %v1543, 0
        %v1555 = vsel %vm960, %v1544, 0
        %1557 = vmatprep.subr.mxu0 0.0
        %1558 = vmatpush1.msra.mxu0 0.0
        %1559 = vmatprep.subr.mxu0 0.0
        %1560 = vmatpush1.msra.mxu0 0.0
        %1561 = vmatprep.subr.mxu0 0.0
        %1562 = vmatpush1.msra.mxu0 0.0
        %1563 = vmatprep.subr.mxu0 0.0
        %1564 = vmatpush1.msra.mxu0 0.0
        %1565 = vmatprep.subr.mxu0 0.0
        %1566 = vmatpush1.msra.mxu0 0.0
        %1567 = vmatprep.subr.mxu0 0.0
        %1568 = vmatpush1.msra.mxu0 0.0
        %1569 = vmatprep.subr.mxu0 0.0
        %1570 = vmatpush1.msra.mxu0 0.0
        %1571 = vmatprep.subr.mxu0 0.0
        %1572 = vmatpush1.msra.mxu0 0.0
        %1573 = vmatprep.subr.mxu0 0.0
        %1574 = vmatpush1.msra.mxu0 0.0
        %1575 = vmatprep.subr.mxu0 0.0
        %1576 = vmatpush1.msra.mxu0 0.0
        %1577 = vmatprep.subr.mxu0 0.0
        %1578 = vmatpush1.msra.mxu0 0.0
        %1579 = vmatprep.subr.mxu0 0.0
        %1580 = vmatpush1.msra.mxu0 0.0
        %1581 = vmatprep.subr.mxu0 0.0
        %1582 = vmatpush1.msra.mxu0 0.0
        %1583 = vmatprep.subr.mxu0 0.0
        %1584 = vmatpush1.msra.mxu0 0.0
        %1585 = vmatprep.subr.mxu0 0.0
        %1586 = vmatpush1.msra.mxu0 %v1548
        %1587 = vmatprep.subr.mxu0 0.0
        %1588 = vmatpush1.msra.mxu0 %v1546
        %1589 = vmatprep.subr.mxu0 0.0
        %1590 = vmatpush2.msra.mxu0 0.0
        %1591 = vmatprep.subr.mxu0 0.0
        %1592 = vmatpush2.msra.mxu0 0.0
        %1593 = vmatprep.subr.mxu0 0.0
        %1594 = vmatpush2.msra.mxu0 0.0
        %1595 = vmatprep.subr.mxu0 0.0
        %1596 = vmatpush2.msra.mxu0 0.0
        %1597 = vmatprep.subr.mxu0 0.0
        %1598 = vmatpush2.msra.mxu0 0.0
        %1599 = vmatprep.subr.mxu0 0.0
        %1600 = vmatpush2.msra.mxu0 0.0
        %1601 = vmatprep.subr.mxu0 0.0
        %1602 = vmatpush2.msra.mxu0 0.0
        %1603 = vmatprep.subr.mxu0 0.0
        %1604 = vmatpush2.msra.mxu0 0.0
        %1605 = vmatprep.subr.mxu0 0.0
        %1606 = vmatpush2.msra.mxu0 0.0
        %1607 = vmatprep.subr.mxu0 0.0
        %1608 = vmatpush2.msra.mxu0 0.0
        %1609 = vmatprep.subr.mxu0 0.0
        %1610 = vmatpush2.msra.mxu0 0.0
        %1611 = vmatprep.subr.mxu0 0.0
        %1612 = vmatpush2.msra.mxu0 0.0
        %1613 = vmatprep.subr.mxu0 0.0
        %1614 = vmatpush2.msra.mxu0 0.0
        %1615 = vmatprep.subr.mxu0 0.0
        %1616 = vmatpush2.msra.mxu0 0.0
        %1617 = vmatprep.subr.mxu0 0.0
        %1618 = vmatpush2.msra.mxu0 0.0
        %1619 = vmatprep.subr.mxu0 0.0
        %1620 = vmatpush2.msra.mxu0 0.0
        %1621 = vmatprep.mubr.f32.mxu0 0.0
        %1622 = vmatmul.mubr.f32.gmra.mxu0 %v1552
        %v1623 = vpop.f32.mrf.mxu0
        %v1624 = vadd.f32 0.0, %v1623
        %v1625 = vpop.f32.mrf.mxu0
        %1626 = vmatprep.mubr.f32.mxu0 0.0
        %1627 = vmatmul.mubr.f32.gmra.mxu0 %v1555
        %v1628 = vpop.f32.mrf.mxu0
        %v1629 = vadd.f32 0.0, %v1628
        %v1630 = vpop.f32.mrf.mxu0
        %1631 = vdwg.mxu0
        %v1633 = vsel %vm874, %v1624, 0
        %v1636 = vsel %vm874, %v1629, 0
        %1638 = vmatprep.subr.mxu0 0.0
        %1639 = vmatpush1.msra.mxu0 0.0
        %1640 = vmatprep.subr.mxu0 0.0
        %1641 = vmatpush1.msra.mxu0 0.0
        %1642 = vmatprep.subr.mxu0 0.0
        %1643 = vmatpush1.msra.mxu0 0.0
        %1644 = vmatprep.subr.mxu0 0.0
        %1645 = vmatpush1.msra.mxu0 0.0
        %1646 = vmatprep.subr.mxu0 0.0
        %1647 = vmatpush1.msra.mxu0 0.0
        %1648 = vmatprep.subr.mxu0 0.0
        %1649 = vmatpush1.msra.mxu0 0.0
        %1650 = vmatprep.subr.mxu0 0.0
        %1651 = vmatpush1.msra.mxu0 0.0
        %1652 = vmatprep.subr.mxu0 0.0
        %1653 = vmatpush1.msra.mxu0 0.0
        %1654 = vmatprep.subr.mxu0 0.0
        %1655 = vmatpush1.msra.mxu0 0.0
        %1656 = vmatprep.subr.mxu0 0.0
        %1657 = vmatpush1.msra.mxu0 0.0
        %1658 = vmatprep.subr.mxu0 0.0
        %1659 = vmatpush1.msra.mxu0 0.0
        %1660 = vmatprep.subr.mxu0 0.0
        %1661 = vmatpush1.msra.mxu0 0.0
        %1662 = vmatprep.subr.mxu0 0.0
        %1663 = vmatpush1.msra.mxu0 0.0
        %1664 = vmatprep.subr.mxu0 0.0
        %1665 = vmatpush1.msra.mxu0 0.0
        %1666 = vmatprep.subr.mxu0 0.0
        %1667 = vmatpush1.msra.mxu0 0.0
        %1668 = vmatprep.subr.mxu0 0.0
        %1669 = vmatpush1.msra.mxu0 %v862
        %1670 = vmatprep.subr.mxu0 0.0
        %1671 = vmatpush2.msra.mxu0 0.0
        %1672 = vmatprep.subr.mxu0 0.0
        %1673 = vmatpush2.msra.mxu0 0.0
        %1674 = vmatprep.subr.mxu0 0.0
        %1675 = vmatpush2.msra.mxu0 0.0
        %1676 = vmatprep.subr.mxu0 0.0
        %1677 = vmatpush2.msra.mxu0 0.0
        %1678 = vmatprep.subr.mxu0 0.0
        %1679 = vmatpush2.msra.mxu0 0.0
        %1680 = vmatprep.subr.mxu0 0.0
        %1681 = vmatpush2.msra.mxu0 0.0
        %1682 = vmatprep.subr.mxu0 0.0
        %1683 = vmatpush2.msra.mxu0 0.0
        %1684 = vmatprep.subr.mxu0 0.0
        %1685 = vmatpush2.msra.mxu0 0.0
        %1686 = vmatprep.subr.mxu0 0.0
        %1687 = vmatpush2.msra.mxu0 0.0
        %1688 = vmatprep.subr.mxu0 0.0
        %1689 = vmatpush2.msra.mxu0 0.0
        %1690 = vmatprep.subr.mxu0 0.0
        %1691 = vmatpush2.msra.mxu0 0.0
        %1692 = vmatprep.subr.mxu0 0.0
        %1693 = vmatpush2.msra.mxu0 0.0
        %1694 = vmatprep.subr.mxu0 0.0
        %1695 = vmatpush2.msra.mxu0 0.0
        %1696 = vmatprep.subr.mxu0 0.0
        %1697 = vmatpush2.msra.mxu0 0.0
        %1698 = vmatprep.subr.mxu0 0.0
        %1699 = vmatpush2.msra.mxu0 0.0
        %1700 = vmatprep.subr.mxu0 0.0
        %1701 = vmatpush2.msra.mxu0 0.0
        %1702 = vmatprep.mubr.f32.mxu0 0.0
        %1703 = vmatmul.mubr.f32.gmra.mxu0 %v1633
        %v1704 = vpop.f32.mrf.mxu0
        %v1705 = vadd.f32 0.0, %v1704
        %v1706 = vpop.f32.mrf.mxu0
        %1707 = vmatprep.mubr.f32.mxu0 0.0
        %1708 = vmatmul.mubr.f32.gmra.mxu0 %v1636
        %v1709 = vpop.f32.mrf.mxu0
        %v1710 = vadd.f32 0.0, %v1709
        %v1711 = vpop.f32.mrf.mxu0
        %1712 = vdwg.mxu0
        %v1713 = vadd.f32 %v1424, %v1705
        %v1714 = vadd.f32 %v1429, %v1710
        %1715 = vrot.lane.b32.xlu0 %v864, 104
        %v1716 = vpop.permute.xlu0 %1715
        %1717 = vrot.lane.b32.xlu0 %v865, 104
        %v1718 = vpop.permute.xlu0 %1717
        %1719 = vrot.lane.b32.xlu0 %v852, 72
        %v1720 = vpop.permute.xlu0 %1719
        %1721 = vrot.lane.b32.xlu0 %v857, 72
        %v1722 = vpop.permute.xlu0 %1721
        %v1723 = vsel %vm874, %v1716, 0
        %v1725 = vsel %vm874, %v1718, 0
        %v1727 = vsel %vm874, %v1720, 0
        %v1729 = vsel %vm874, %v1722, 0
        %1731 = vmatprep.subr.mxu0 0.0
        %1732 = vmatpush1.xpose.msra.mxu0 0.0
        %1733 = vmatprep.subr.mxu0 0.0
        %1734 = vmatpush1.xpose.msra.mxu0 0.0
        %1735 = vmatprep.subr.mxu0 0.0
        %1736 = vmatpush1.xpose.msra.mxu0 0.0
        %1737 = vmatprep.subr.mxu0 0.0
        %1738 = vmatpush1.xpose.msra.mxu0 0.0
        %1739 = vmatprep.subr.mxu0 0.0
        %1740 = vmatpush1.xpose.msra.mxu0 0.0
        %1741 = vmatprep.subr.mxu0 0.0
        %1742 = vmatpush1.xpose.msra.mxu0 0.0
        %1743 = vmatprep.subr.mxu0 0.0
        %1744 = vmatpush1.xpose.msra.mxu0 0.0
        %1745 = vmatprep.subr.mxu0 0.0
        %1746 = vmatpush1.xpose.msra.mxu0 0.0
        %1747 = vmatprep.subr.mxu0 0.0
        %1748 = vmatpush1.xpose.msra.mxu0 0.0
        %1749 = vmatprep.subr.mxu0 0.0
        %1750 = vmatpush1.xpose.msra.mxu0 0.0
        %1751 = vmatprep.subr.mxu0 0.0
        %1752 = vmatpush1.xpose.msra.mxu0 0.0
        %1753 = vmatprep.subr.mxu0 0.0
        %1754 = vmatpush1.xpose.msra.mxu0 0.0
        %1755 = vmatprep.subr.mxu0 0.0
        %1756 = vmatpush1.xpose.msra.mxu0 0.0
        %1757 = vmatprep.subr.mxu0 0.0
        %1758 = vmatpush1.xpose.msra.mxu0 0.0
        %1759 = vmatprep.subr.mxu0 0.0
        %1760 = vmatpush1.xpose.msra.mxu0 %v1729
        %1761 = vmatprep.subr.mxu0 0.0
        %1762 = vmatpush1.xpose.msra.mxu0 %v1727
        %1763 = vmatprep.subr.mxu0 0.0
        %1764 = vmatpush2.xpose.msra.mxu0 0.0
        %1765 = vmatprep.subr.mxu0 0.0
        %1766 = vmatpush2.xpose.msra.mxu0 0.0
        %1767 = vmatprep.subr.mxu0 0.0
        %1768 = vmatpush2.xpose.msra.mxu0 0.0
        %1769 = vmatprep.subr.mxu0 0.0
        %1770 = vmatpush2.xpose.msra.mxu0 0.0
        %1771 = vmatprep.subr.mxu0 0.0
        %1772 = vmatpush2.xpose.msra.mxu0 0.0
        %1773 = vmatprep.subr.mxu0 0.0
        %1774 = vmatpush2.xpose.msra.mxu0 0.0
        %1775 = vmatprep.subr.mxu0 0.0
        %1776 = vmatpush2.xpose.msra.mxu0 0.0
        %1777 = vmatprep.subr.mxu0 0.0
        %1778 = vmatpush2.xpose.msra.mxu0 0.0
        %1779 = vmatprep.subr.mxu0 0.0
        %1780 = vmatpush2.xpose.msra.mxu0 0.0
        %1781 = vmatprep.subr.mxu0 0.0
        %1782 = vmatpush2.xpose.msra.mxu0 0.0
        %1783 = vmatprep.subr.mxu0 0.0
        %1784 = vmatpush2.xpose.msra.mxu0 0.0
        %1785 = vmatprep.subr.mxu0 0.0
        %1786 = vmatpush2.xpose.msra.mxu0 0.0
        %1787 = vmatprep.subr.mxu0 0.0
        %1788 = vmatpush2.xpose.msra.mxu0 0.0
        %1789 = vmatprep.subr.mxu0 0.0
        %1790 = vmatpush2.xpose.msra.mxu0 0.0
        %1791 = vmatprep.subr.mxu0 0.0
        %1792 = vmatpush2.xpose.msra.mxu0 0.0
        %1793 = vmatprep.subr.mxu0 0.0
        %1794 = vmatpush2.xpose.msra.mxu0 0.0
        %1795 = vmatprep.mubr.f32.mxu0 0.0
        %1796 = vmatmul.mubr.f32.gmra.mxu0 %v1723
        %v1797 = vpop.f32.mrf.mxu0
        %v1798 = vadd.f32 %v866, %v1797
        %v1799 = vpop.f32.mrf.mxu0
        %1800 = vmatprep.mubr.f32.mxu0 0.0
        %1801 = vmatmul.mubr.f32.gmra.mxu0 %v1725
        %v1802 = vpop.f32.mrf.mxu0
        %v1803 = vadd.f32 %v867, %v1802
        %v1804 = vpop.f32.mrf.mxu0
        %1805 = vdwg.mxu0
        %v1806 = vsel %vm960, %v1798, -inf
        %1807 = vmax.xlane.f32.xlu0 %v1806
        %v1808 = vpop.xlane.xlu0 %1807
        %v1809 = vsel %vm960, %v1803, -inf
        %1810 = vmax.xlane.f32.xlu0 %v1809
        %v1811 = vpop.xlane.xlu0 %1810
        %v1812 = vsub.f32 %v1798, %v1808
        %v1813 = vsub.f32 %v1803, %v1811
        %v1814 = vmul.f32 %v1812, 1.442695
        %v1815 = vpow.pop %v1814
        %v1816 = vmul.f32 %v1813, 1.442695
        %v1817 = vpow.pop %v1816
        %v1818 = vsel %vm960, %v1815, 0.0
        %1819 = vadd.xlane.f32.xlu0 %v1818
        %v1820 = vpop.xlane.xlu0 %1819
        %v1821 = vsel %vm960, %v1817, 0.0
        %1822 = vadd.xlane.f32.xlu0 %v1821
        %v1823 = vpop.xlane.xlu0 %1822
        %v1824 = vrcp.pop %v1820
        %v1825 = vrcp.pop %v1823
        %v1826 = vmul.f32 %v1815, %v1824
        %v1827 = vmul.f32 %v1817, %v1825
        %1828 = vrot.lane.b32.xlu0 %v852, 40
        %v1829 = vpop.permute.xlu0 %1828
        %1830 = vrot.lane.b32.xlu0 %v857, 40
        %v1831 = vpop.permute.xlu0 %1830
        %v1835 = vsel %vm960, %v1826, 0
        %v1838 = vsel %vm960, %v1827, 0
        %1840 = vmatprep.subr.mxu0 0.0
        %1841 = vmatpush1.msra.mxu0 0.0
        %1842 = vmatprep.subr.mxu0 0.0
        %1843 = vmatpush1.msra.mxu0 0.0
        %1844 = vmatprep.subr.mxu0 0.0
        %1845 = vmatpush1.msra.mxu0 0.0
        %1846 = vmatprep.subr.mxu0 0.0
        %1847 = vmatpush1.msra.mxu0 0.0
        %1848 = vmatprep.subr.mxu0 0.0
        %1849 = vmatpush1.msra.mxu0 0.0
        %1850 = vmatprep.subr.mxu0 0.0
        %1851 = vmatpush1.msra.mxu0 0.0
        %1852 = vmatprep.subr.mxu0 0.0
        %1853 = vmatpush1.msra.mxu0 0.0
        %1854 = vmatprep.subr.mxu0 0.0
        %1855 = vmatpush1.msra.mxu0 0.0
        %1856 = vmatprep.subr.mxu0 0.0
        %1857 = vmatpush1.msra.mxu0 0.0
        %1858 = vmatprep.subr.mxu0 0.0
        %1859 = vmatpush1.msra.mxu0 0.0
        %1860 = vmatprep.subr.mxu0 0.0
        %1861 = vmatpush1.msra.mxu0 0.0
        %1862 = vmatprep.subr.mxu0 0.0
        %1863 = vmatpush1.msra.mxu0 0.0
        %1864 = vmatprep.subr.mxu0 0.0
        %1865 = vmatpush1.msra.mxu0 0.0
        %1866 = vmatprep.subr.mxu0 0.0
        %1867 = vmatpush1.msra.mxu0 0.0
        %1868 = vmatprep.subr.mxu0 0.0
        %1869 = vmatpush1.msra.mxu0 %v1831
        %1870 = vmatprep.subr.mxu0 0.0
        %1871 = vmatpush1.msra.mxu0 %v1829
        %1872 = vmatprep.subr.mxu0 0.0
        %1873 = vmatpush2.msra.mxu0 0.0
        %1874 = vmatprep.subr.mxu0 0.0
        %1875 = vmatpush2.msra.mxu0 0.0
        %1876 = vmatprep.subr.mxu0 0.0
        %1877 = vmatpush2.msra.mxu0 0.0
        %1878 = vmatprep.subr.mxu0 0.0
        %1879 = vmatpush2.msra.mxu0 0.0
        %1880 = vmatprep.subr.mxu0 0.0
        %1881 = vmatpush2.msra.mxu0 0.0
        %1882 = vmatprep.subr.mxu0 0.0
        %1883 = vmatpush2.msra.mxu0 0.0
        %1884 = vmatprep.subr.mxu0 0.0
        %1885 = vmatpush2.msra.mxu0 0.0
        %1886 = vmatprep.subr.mxu0 0.0
        %1887 = vmatpush2.msra.mxu0 0.0
        %1888 = vmatprep.subr.mxu0 0.0
        %1889 = vmatpush2.msra.mxu0 0.0
        %1890 = vmatprep.subr.mxu0 0.0
        %1891 = vmatpush2.msra.mxu0 0.0
        %1892 = vmatprep.subr.mxu0 0.0
        %1893 = vmatpush2.msra.mxu0 0.0
        %1894 = vmatprep.subr.mxu0 0.0
        %1895 = vmatpush2.msra.mxu0 0.0
        %1896 = vmatprep.subr.mxu0 0.0
        %1897 = vmatpush2.msra.mxu0 0.0
        %1898 = vmatprep.subr.mxu0 0.0
        %1899 = vmatpush2.msra.mxu0 0.0
        %1900 = vmatprep.subr.mxu0 0.0
        %1901 = vmatpush2.msra.mxu0 0.0
        %1902 = vmatprep.subr.mxu0 0.0
        %1903 = vmatpush2.msra.mxu0 0.0
        %1904 = vmatprep.mubr.f32.mxu0 0.0
        %1905 = vmatmul.mubr.f32.gmra.mxu0 %v1835
        %v1906 = vpop.f32.mrf.mxu0
        %v1907 = vadd.f32 0.0, %v1906
        %v1908 = vpop.f32.mrf.mxu0
        %1909 = vmatprep.mubr.f32.mxu0 0.0
        %1910 = vmatmul.mubr.f32.gmra.mxu0 %v1838
        %v1911 = vpop.f32.mrf.mxu0
        %v1912 = vadd.f32 0.0, %v1911
        %v1913 = vpop.f32.mrf.mxu0
        %1914 = vdwg.mxu0
        %v1916 = vsel %vm874, %v1907, 0
        %v1919 = vsel %vm874, %v1912, 0
        %1921 = vmatprep.subr.mxu0 0.0
        %1922 = vmatpush1.msra.mxu0 0.0
        %1923 = vmatprep.subr.mxu0 0.0
        %1924 = vmatpush1.msra.mxu0 0.0
        %1925 = vmatprep.subr.mxu0 0.0
        %1926 = vmatpush1.msra.mxu0 0.0
        %1927 = vmatprep.subr.mxu0 0.0
        %1928 = vmatpush1.msra.mxu0 0.0
        %1929 = vmatprep.subr.mxu0 0.0
        %1930 = vmatpush1.msra.mxu0 0.0
        %1931 = vmatprep.subr.mxu0 0.0
        %1932 = vmatpush1.msra.mxu0 0.0
        %1933 = vmatprep.subr.mxu0 0.0
        %1934 = vmatpush1.msra.mxu0 0.0
        %1935 = vmatprep.subr.mxu0 0.0
        %1936 = vmatpush1.msra.mxu0 0.0
        %1937 = vmatprep.subr.mxu0 0.0
        %1938 = vmatpush1.msra.mxu0 0.0
        %1939 = vmatprep.subr.mxu0 0.0
        %1940 = vmatpush1.msra.mxu0 0.0
        %1941 = vmatprep.subr.mxu0 0.0
        %1942 = vmatpush1.msra.mxu0 0.0
        %1943 = vmatprep.subr.mxu0 0.0
        %1944 = vmatpush1.msra.mxu0 0.0
        %1945 = vmatprep.subr.mxu0 0.0
        %1946 = vmatpush1.msra.mxu0 0.0
        %1947 = vmatprep.subr.mxu0 0.0
        %1948 = vmatpush1.msra.mxu0 0.0
        %1949 = vmatprep.subr.mxu0 0.0
        %1950 = vmatpush1.msra.mxu0 0.0
        %1951 = vmatprep.subr.mxu0 0.0
        %1952 = vmatpush1.msra.mxu0 %v863
        %1953 = vmatprep.subr.mxu0 0.0
        %1954 = vmatpush2.msra.mxu0 0.0
        %1955 = vmatprep.subr.mxu0 0.0
        %1956 = vmatpush2.msra.mxu0 0.0
        %1957 = vmatprep.subr.mxu0 0.0
        %1958 = vmatpush2.msra.mxu0 0.0
        %1959 = vmatprep.subr.mxu0 0.0
        %1960 = vmatpush2.msra.mxu0 0.0
        %1961 = vmatprep.subr.mxu0 0.0
        %1962 = vmatpush2.msra.mxu0 0.0
        %1963 = vmatprep.subr.mxu0 0.0
        %1964 = vmatpush2.msra.mxu0 0.0
        %1965 = vmatprep.subr.mxu0 0.0
        %1966 = vmatpush2.msra.mxu0 0.0
        %1967 = vmatprep.subr.mxu0 0.0
        %1968 = vmatpush2.msra.mxu0 0.0
        %1969 = vmatprep.subr.mxu0 0.0
        %1970 = vmatpush2.msra.mxu0 0.0
        %1971 = vmatprep.subr.mxu0 0.0
        %1972 = vmatpush2.msra.mxu0 0.0
        %1973 = vmatprep.subr.mxu0 0.0
        %1974 = vmatpush2.msra.mxu0 0.0
        %1975 = vmatprep.subr.mxu0 0.0
        %1976 = vmatpush2.msra.mxu0 0.0
        %1977 = vmatprep.subr.mxu0 0.0
        %1978 = vmatpush2.msra.mxu0 0.0
        %1979 = vmatprep.subr.mxu0 0.0
        %1980 = vmatpush2.msra.mxu0 0.0
        %1981 = vmatprep.subr.mxu0 0.0
        %1982 = vmatpush2.msra.mxu0 0.0
        %1983 = vmatprep.subr.mxu0 0.0
        %1984 = vmatpush2.msra.mxu0 0.0
        %1985 = vmatprep.mubr.f32.mxu0 0.0
        %1986 = vmatmul.mubr.f32.gmra.mxu0 %v1916
        %v1987 = vpop.f32.mrf.mxu0
        %v1988 = vadd.f32 0.0, %v1987
        %v1989 = vpop.f32.mrf.mxu0
        %1990 = vmatprep.mubr.f32.mxu0 0.0
        %1991 = vmatmul.mubr.f32.gmra.mxu0 %v1919
        %v1992 = vpop.f32.mrf.mxu0
        %v1993 = vadd.f32 0.0, %v1992
        %v1994 = vpop.f32.mrf.mxu0
        %1995 = vdwg.mxu0
        %v1996 = vadd.f32 %v1713, %v1988
        %v1997 = vadd.f32 %v1714, %v1993
        %v1998 = vld [vmem:[%s678] sm:$0x1]
        %v2000 = vlaneseq
        %v2001 = vshrl.u32 %v2000, 7
        %v2002 = vsub.s32 0, %v2001
        %v2003 = vrot.slane %v1998, %v2002
        %v2005 = vadd.f32 %v1996, %v2003
        %v2006 = vadd.f32 %v1997, %v2003
        %v2007 = vadd.f32 %v765, %v2005
        %v2008 = vadd.f32 %v766, %v2006
        %v2009 = vld [vmem:[%s681] sm:$0x1]
        %v2010 = vld [vmem:[%s684] sm:$0x1]
        %v2011 = vsel %vm778, %v2007, 0.0
        %2012 = vadd.xlane.f32.xlu0 %v2011
        %v2013 = vpop.xlane.xlu0 %2012
        %v2014 = vsel %vm778, %v2008, 0.0
        %2015 = vadd.xlane.f32.xlu0 %v2014
        %v2016 = vpop.xlane.xlu0 %2015
        %v2017 = vrcp.pop 32.0
        %v2018 = vmul.f32 %v2013, %v2017
        %v2019 = vmul.f32 %v2016, %v2017
        %v2020 = vsub.f32 %v2007, %v2018
        %v2021 = vsub.f32 %v2008, %v2019
        %v2022 = vmul.f32 %v2020, %v2020
        %v2023 = vmul.f32 %v2021, %v2021
        %v2024 = vsel %vm778, %v2022, 0.0
        %2025 = vadd.xlane.f32.xlu0 %v2024
        %v2026 = vpop.xlane.xlu0 %2025
        %v2027 = vsel %vm778, %v2023, 0.0
        %2028 = vadd.xlane.f32.xlu0 %v2027
        %v2029 = vpop.xlane.xlu0 %2028
        %v2030 = vmul.f32 %v2026, %v2017
        %v2031 = vmul.f32 %v2029, %v2017
        %v2032 = vadd.f32 %v2030, 1e-05
        %v2033 = vadd.f32 %v2031, 1e-05
        %v2034 = vrsqrt.pop %v2032
        %v2035 = vrsqrt.pop %v2033
        %v2036 = vmul.f32 %v2020, %v2034
        %v2037 = vmul.f32 %v2021, %v2035
        %v2039 = vlaneseq
        %v2040 = vshrl.u32 %v2039, 7
        %v2041 = vsub.s32 0, %v2040
        %v2042 = vrot.slane %v2009, %v2041
        %v2044 = vmul.f32 %v2036, %v2042
        %v2045 = vmul.f32 %v2037, %v2042
        %v2047 = vlaneseq
        %v2048 = vshrl.u32 %v2047, 7
        %v2049 = vsub.s32 0, %v2048
        %v2050 = vrot.slane %v2010, %v2049
        %v2052 = vadd.f32 %v2044, %v2050
        %v2053 = vadd.f32 %v2045, %v2050
        %v2054 = vld [vmem:[%s689] sm:$0xff]
        %v2055 = vld [vmem:[%s689 + $0x8] sm:$0xff]
        %v2056 = vld [vmem:[%s689 + $0x10] sm:$0xff]
        %v2057 = vld [vmem:[%s689 + $0x18] sm:$0xff]
        %v2058 = vld [vmem:[%s692] sm:$0x1]
        %v2060 = vlaneseq
        %v2061 = vshrl.u32 %v2060, 7
        %v2062 = vsub.s32 0, %v2061
        %v2063 = vrot.slane %v2058, %v2062
        %v2066 = vsel %vm778, %v2052, 0
        %v2069 = vsel %vm778, %v2053, 0
        %2071 = vmatprep.subr.mxu0 0.0
        %2072 = vmatpush1.msra.mxu0 0.0
        %2073 = vmatprep.subr.mxu0 0.0
        %2074 = vmatpush1.msra.mxu0 0.0
        %2075 = vmatprep.subr.mxu0 0.0
        %2076 = vmatpush1.msra.mxu0 0.0
        %2077 = vmatprep.subr.mxu0 0.0
        %2078 = vmatpush1.msra.mxu0 0.0
        %2079 = vmatprep.subr.mxu0 0.0
        %2080 = vmatpush1.msra.mxu0 0.0
        %2081 = vmatprep.subr.mxu0 0.0
        %2082 = vmatpush1.msra.mxu0 0.0
        %2083 = vmatprep.subr.mxu0 0.0
        %2084 = vmatpush1.msra.mxu0 0.0
        %2085 = vmatprep.subr.mxu0 0.0
        %2086 = vmatpush1.msra.mxu0 0.0
        %2087 = vmatprep.subr.mxu0 0.0
        %2088 = vmatpush1.msra.mxu0 0.0
        %2089 = vmatprep.subr.mxu0 0.0
        %2090 = vmatpush1.msra.mxu0 0.0
        %2091 = vmatprep.subr.mxu0 0.0
        %2092 = vmatpush1.msra.mxu0 0.0
        %2093 = vmatprep.subr.mxu0 0.0
        %2094 = vmatpush1.msra.mxu0 0.0
        %2095 = vmatprep.subr.mxu0 0.0
        %2096 = vmatpush1.msra.mxu0 %v2057
        %2097 = vmatprep.subr.mxu0 0.0
        %2098 = vmatpush1.msra.mxu0 %v2056
        %2099 = vmatprep.subr.mxu0 0.0
        %2100 = vmatpush1.msra.mxu0 %v2055
        %2101 = vmatprep.subr.mxu0 0.0
        %2102 = vmatpush1.msra.mxu0 %v2054
        %2103 = vmatprep.subr.mxu0 0.0
        %2104 = vmatpush2.msra.mxu0 0.0
        %2105 = vmatprep.subr.mxu0 0.0
        %2106 = vmatpush2.msra.mxu0 0.0
        %2107 = vmatprep.subr.mxu0 0.0
        %2108 = vmatpush2.msra.mxu0 0.0
        %2109 = vmatprep.subr.mxu0 0.0
        %2110 = vmatpush2.msra.mxu0 0.0
        %2111 = vmatprep.subr.mxu0 0.0
        %2112 = vmatpush2.msra.mxu0 0.0
        %2113 = vmatprep.subr.mxu0 0.0
        %2114 = vmatpush2.msra.mxu0 0.0
        %2115 = vmatprep.subr.mxu0 0.0
        %2116 = vmatpush2.msra.mxu0 0.0
        %2117 = vmatprep.subr.mxu0 0.0
        %2118 = vmatpush2.msra.mxu0 0.0
        %2119 = vmatprep.subr.mxu0 0.0
        %2120 = vmatpush2.msra.mxu0 0.0
        %2121 = vmatprep.subr.mxu0 0.0
        %2122 = vmatpush2.msra.mxu0 0.0
        %2123 = vmatprep.subr.mxu0 0.0
        %2124 = vmatpush2.msra.mxu0 0.0
        %2125 = vmatprep.subr.mxu0 0.0
        %2126 = vmatpush2.msra.mxu0 0.0
        %2127 = vmatprep.subr.mxu0 0.0
        %2128 = vmatpush2.msra.mxu0 0.0
        %2129 = vmatprep.subr.mxu0 0.0
        %2130 = vmatpush2.msra.mxu0 0.0
        %2131 = vmatprep.subr.mxu0 0.0
        %2132 = vmatpush2.msra.mxu0 0.0
        %2133 = vmatprep.subr.mxu0 0.0
        %2134 = vmatpush2.msra.mxu0 0.0
        %2135 = vmatprep.mubr.f32.mxu0 0.0
        %2136 = vmatmul.mubr.f32.gmra.mxu0 %v2066
        %v2137 = vpop.f32.mrf.mxu0
        %v2138 = vadd.f32 %v2063, %v2137
        %v2139 = vpop.f32.mrf.mxu0
        %2140 = vmatprep.mubr.f32.mxu0 0.0
        %2141 = vmatmul.mubr.f32.gmra.mxu0 %v2069
        %v2142 = vpop.f32.mrf.mxu0
        %v2143 = vadd.f32 %v2063, %v2142
        %v2144 = vpop.f32.mrf.mxu0
        %2145 = vdwg.mxu0
        %v2146 = vmul.f32 %v2138, 0.5
        %v2147 = vmul.f32 %v2143, 0.5
        %v2148 = vmul.f32 %v2138, 0.044715
        %v2149 = vmul.f32 %v2143, 0.044715
        %v2150 = vmul.f32 %v2148, %v2138
        %v2151 = vmul.f32 %v2149, %v2143
        %v2152 = vmul.f32 %v2150, %v2138
        %v2153 = vmul.f32 %v2151, %v2143
        %v2154 = vadd.f32 %v2138, %v2152
        %v2155 = vadd.f32 %v2143, %v2153
        %v2156 = vmul.f32 %v2154, 0.7978846
        %v2157 = vmul.f32 %v2155, 0.7978846
        %v2158 = vtanh.pop %v2156
        %v2159 = vtanh.pop %v2157
        %v2160 = vadd.f32 %v2158, 1.0
        %v2161 = vadd.f32 %v2159, 1.0
        %v2162 = vmul.f32 %v2146, %v2160
        %v2163 = vmul.f32 %v2147, %v2161
        %v2164 = vld [vmem:[%s697] sm:$0xff]
        %v2165 = vld [vmem:[%s697 + $0x8] sm:$0xff]
        %v2166 = vld [vmem:[%s697 + $0x10] sm:$0xff]
        %v2167 = vld [vmem:[%s697 + $0x18] sm:$0xff]
        %v2168 = vld [vmem:[%s697 + $0x20] sm:$0xff]
        %v2169 = vld [vmem:[%s697 + $0x28] sm:$0xff]
        %v2170 = vld [vmem:[%s697 + $0x30] sm:$0xff]
        %v2171 = vld [vmem:[%s697 + $0x38] sm:$0xff]
        %v2172 = vld [vmem:[%s697 + $0x40] sm:$0xff]
        %v2173 = vld [vmem:[%s697 + $0x48] sm:$0xff]
        %v2174 = vld [vmem:[%s697 + $0x50] sm:$0xff]
        %v2175 = vld [vmem:[%s697 + $0x58] sm:$0xff]
        %v2176 = vld [vmem:[%s697 + $0x60] sm:$0xff]
        %v2177 = vld [vmem:[%s697 + $0x68] sm:$0xff]
        %v2178 = vld [vmem:[%s697 + $0x70] sm:$0xff]
        %v2179 = vld [vmem:[%s697 + $0x78] sm:$0xff]
        %v2180 = vld [vmem:[%s700] sm:$0x1]
        %v2182 = vlaneseq
        %v2183 = vshrl.u32 %v2182, 7
        %v2184 = vsub.s32 0, %v2183
        %v2185 = vrot.slane %v2180, %v2184
        %2187 = vmatprep.subr.mxu0 0.0
        %2188 = vmatpush1.msra.mxu0 %v2179
        %2189 = vmatprep.subr.mxu0 0.0
        %2190 = vmatpush1.msra.mxu0 %v2178
        %2191 = vmatprep.subr.mxu0 0.0
        %2192 = vmatpush1.msra.mxu0 %v2177
        %2193 = vmatprep.subr.mxu0 0.0
        %2194 = vmatpush1.msra.mxu0 %v2176
        %2195 = vmatprep.subr.mxu0 0.0
        %2196 = vmatpush1.msra.mxu0 %v2175
        %2197 = vmatprep.subr.mxu0 0.0
        %2198 = vmatpush1.msra.mxu0 %v2174
        %2199 = vmatprep.subr.mxu0 0.0
        %2200 = vmatpush1.msra.mxu0 %v2173
        %2201 = vmatprep.subr.mxu0 0.0
        %2202 = vmatpush1.msra.mxu0 %v2172
        %2203 = vmatprep.subr.mxu0 0.0
        %2204 = vmatpush1.msra.mxu0 %v2171
        %2205 = vmatprep.subr.mxu0 0.0
        %2206 = vmatpush1.msra.mxu0 %v2170
        %2207 = vmatprep.subr.mxu0 0.0
        %2208 = vmatpush1.msra.mxu0 %v2169
        %2209 = vmatprep.subr.mxu0 0.0
        %2210 = vmatpush1.msra.mxu0 %v2168
        %2211 = vmatprep.subr.mxu0 0.0
        %2212 = vmatpush1.msra.mxu0 %v2167
        %2213 = vmatprep.subr.mxu0 0.0
        %2214 = vmatpush1.msra.mxu0 %v2166
        %2215 = vmatprep.subr.mxu0 0.0
        %2216 = vmatpush1.msra.mxu0 %v2165
        %2217 = vmatprep.subr.mxu0 0.0
        %2218 = vmatpush1.msra.mxu0 %v2164
        %2219 = vmatprep.subr.mxu0 0.0
        %2220 = vmatpush2.msra.mxu0 0.0
        %2221 = vmatprep.subr.mxu0 0.0
        %2222 = vmatpush2.msra.mxu0 0.0
        %2223 = vmatprep.subr.mxu0 0.0
        %2224 = vmatpush2.msra.mxu0 0.0
        %2225 = vmatprep.subr.mxu0 0.0
        %2226 = vmatpush2.msra.mxu0 0.0
        %2227 = vmatprep.subr.mxu0 0.0
        %2228 = vmatpush2.msra.mxu0 0.0
        %2229 = vmatprep.subr.mxu0 0.0
        %2230 = vmatpush2.msra.mxu0 0.0
        %2231 = vmatprep.subr.mxu0 0.0
        %2232 = vmatpush2.msra.mxu0 0.0
        %2233 = vmatprep.subr.mxu0 0.0
        %2234 = vmatpush2.msra.mxu0 0.0
        %2235 = vmatprep.subr.mxu0 0.0
        %2236 = vmatpush2.msra.mxu0 0.0
        %2237 = vmatprep.subr.mxu0 0.0
        %2238 = vmatpush2.msra.mxu0 0.0
        %2239 = vmatprep.subr.mxu0 0.0
        %2240 = vmatpush2.msra.mxu0 0.0
        %2241 = vmatprep.subr.mxu0 0.0
        %2242 = vmatpush2.msra.mxu0 0.0
        %2243 = vmatprep.subr.mxu0 0.0
        %2244 = vmatpush2.msra.mxu0 0.0
        %2245 = vmatprep.subr.mxu0 0.0
        %2246 = vmatpush2.msra.mxu0 0.0
        %2247 = vmatprep.subr.mxu0 0.0
        %2248 = vmatpush2.msra.mxu0 0.0
        %2249 = vmatprep.subr.mxu0 0.0
        %2250 = vmatpush2.msra.mxu0 0.0
        %2251 = vmatprep.mubr.f32.mxu0 0.0
        %2252 = vmatmul.mubr.f32.gmra.mxu0 %v2162
        %v2253 = vpop.f32.mrf.mxu0
        %v2254 = vadd.f32 %v2185, %v2253
        %v2255 = vpop.f32.mrf.mxu0
        %2256 = vmatprep.mubr.f32.mxu0 0.0
        %2257 = vmatmul.mubr.f32.gmra.mxu0 %v2163
        %v2258 = vpop.f32.mrf.mxu0
        %v2259 = vadd.f32 %v2185, %v2258
        %v2260 = vpop.f32.mrf.mxu0
        %2261 = vdwg.mxu0
        %v2262 = vadd.f32 %v2052, %v2254
        %v2263 = vadd.f32 %v2053, %v2259
        %v2264 = vld [vmem:[%s703] sm:$0x1]
        %v2265 = vld [vmem:[%s706] sm:$0x1]
        %v2266 = vsel %vm778, %v2262, 0.0
        %2267 = vadd.xlane.f32.xlu0 %v2266
        %v2268 = vpop.xlane.xlu0 %2267
        %v2269 = vsel %vm778, %v2263, 0.0
        %2270 = vadd.xlane.f32.xlu0 %v2269
        %v2271 = vpop.xlane.xlu0 %2270
        %v2272 = vmul.f32 %v2268, %v2017
        %v2273 = vmul.f32 %v2271, %v2017
        %v2274 = vsub.f32 %v2262, %v2272
        %v2275 = vsub.f32 %v2263, %v2273
        %v2276 = vmul.f32 %v2274, %v2274
        %v2277 = vmul.f32 %v2275, %v2275
        %v2278 = vsel %vm778, %v2276, 0.0
        %2279 = vadd.xlane.f32.xlu0 %v2278
        %v2280 = vpop.xlane.xlu0 %2279
        %v2281 = vsel %vm778, %v2277, 0.0
        %2282 = vadd.xlane.f32.xlu0 %v2281
        %v2283 = vpop.xlane.xlu0 %2282
        %v2284 = vmul.f32 %v2280, %v2017
        %v2285 = vmul.f32 %v2283, %v2017
        %v2286 = vadd.f32 %v2284, 1e-05
        %v2287 = vadd.f32 %v2285, 1e-05
        %v2288 = vrsqrt.pop %v2286
        %v2289 = vrsqrt.pop %v2287
        %v2290 = vmul.f32 %v2274, %v2288
        %v2291 = vmul.f32 %v2275, %v2289
        %v2293 = vlaneseq
        %v2294 = vshrl.u32 %v2293, 7
        %v2295 = vsub.s32 0, %v2294
        %v2296 = vrot.slane %v2264, %v2295
        %v2298 = vmul.f32 %v2290, %v2296
        %v2299 = vmul.f32 %v2291, %v2296
        %v2301 = vlaneseq
        %v2302 = vshrl.u32 %v2301, 7
        %v2303 = vsub.s32 0, %v2302
        %v2304 = vrot.slane %v2265, %v2303
        %v2306 = vadd.f32 %v2298, %v2304
        %v2307 = vadd.f32 %v2299, %v2304
        %2308 = vst.msk [vmem:[#allocation2] sm:$0xff] %vm778, %v2306
        %2309 = vst.msk [vmem:[#allocation2 + $0x8] sm:$0xff] %vm778, %v2307
        %p2310 = scmp.eq.s32.totalorder %s29, 1
        // Predicated region
        $region93: #{tpu_custom_call.1} parent=87 // pred_check
          %p2311 = pneg %p2310
        $region94: #{tpu_custom_call.1} parent=87 // pred_check_branch
          %2313 = sbr.rel (%p2311) target = $region96
        $region95: #{tpu_custom_call.1} parent=87 // pred_region
          %v2315 = vrot.slane %v2306, 4
          %2316 = vrot.lane.b32.xlu0 %v2315, 32
          %v2317 = vpop.permute.xlu0 %2316
          %2320 = vrot.lane.b32.xlu0 %v2307, 64
          %v2321 = vpop.permute.xlu0 %2320
          %v2323 = vrot.slane %v2307, 4
          %2324 = vrot.lane.b32.xlu0 %v2323, 96
          %v2325 = vpop.permute.xlu0 %2324
          %v2327 = vsel %vm778, %v2306, %v2317
          %vm2328 = vcmask 523264
          %v2329 = vsel %vm2328, %v2327, %v2321
          %vm2330 = vcmask 785408
          %v2331 = vsel %vm2330, %v2329, %v2325
          %2332 = vst [vmem:[#allocation3] sm:$0xf] %v2331
        $region96: #{tpu_custom_call.1} parent=87 // pred_fallthru
          _
        // Predicated region
        $region97: #{tpu_custom_call.1} parent=87 // pred_check
          %p2333 = pneg %p459
        $region98: #{tpu_custom_call.1} parent=87 // pred_check_branch
          %2335 = sbr.rel (%p2333) target = $region100
        $region99: #{tpu_custom_call.1} parent=87 // pred_region
          %s2337 = ssub.s32 64, 64
          %2338 = vsyncadd [#allocation4], %s2337
          %s2340 = sshll.u32 [#allocation3], 4
          %s2341 = int_to_ptr.vmem [resolvable:$true] %s2340
          %2343 = dma.vmem_to_hbm [thread:$0]  %s2341, 64, %s17, [#allocation4]
        $region100: #{tpu_custom_call.1} parent=87 // pred_fallthru
          _
        // Predicated region
        $region101: #{tpu_custom_call.1} parent=87 // pred_check
          %p2344 = pneg %p459
        $region102: #{tpu_custom_call.1} parent=87 // pred_check_branch
          %2346 = sbr.rel (%p2344) target = $region104
        $region103: #{tpu_custom_call.1} parent=87 // pred_region
          %2347 = dma.done [#allocation4], 64
        $region104: #{tpu_custom_call.1} parent=87 // pred_fallthru
          _
      $region88: #{tpu_custom_call.1} parent=5 // pred_fallthru
        _
      %p2348 = scmp.le.s32.totalorder 2, %s24
      // Predicated region
      $region105: #{tpu_custom_call.1} parent=5 // pred_check
        %p2349 = pneg %p2348
      $region106: #{tpu_custom_call.1} parent=5 // pred_check_branch
        %2351 = sbr.rel (%p2349) target = $region108
      $region107: #{tpu_custom_call.1} parent=5 // pred_region
        %s2352 = ssub.s32 %s24, 2
      $region108: #{tpu_custom_call.1} parent=5 // pred_fallthru
        _
    $region6: #{tpu_custom_call.1} parent=1 // loop_footer
      %s28 = sadd.s32 1, %s24
    $region7: #{tpu_custom_call.1} parent=1 // loop_footer_branch
      %23 = sbr.rel target = $region3
    $region8: #{tpu_custom_call.1} parent=1 // loop_exit
      _
    %2353 = vsyncpa [#allocation4], 1
    %s2354 = scalar_lea.sflag [#allocation4], 1
    %2355 = vsyncpa %s2354, 1

</llo_original>
